<compile_context>
chip_gen: v5e
topology: v5e:2x2
jax: 0.10.0
libtpu: 0.0.40
codegen_flags: <defaults>
</compile_context>

<pallas_src>
from functools import partial

import jax
import jax.numpy as jnp
from jax.experimental import pallas as pl
from jax.experimental.pallas import tpu as pltpu

NORM_EPS = 1e-5


def _emhsa_kernel(*refs, num_heads, head_dim, sr_ratio, mm_dtype):
    if sr_ratio > 1:
        (x_ref, pool_ref, wq_ref, bq_ref, wkv_ref, bkv_ref,
         wp_ref, bp_ref, bn_s_ref, bn_b_ref, o_ref) = refs
    else:
        (x_ref, wq_ref, bq_ref, wkv_ref, bkv_ref,
         wp_ref, bp_ref, o_ref) = refs
        pool_ref = bn_s_ref = bn_b_ref = None

    x = x_ref[0]                                   # (N, C), f32
    N, C = x.shape
    x_mm = x.astype(mm_dtype)

    # Q projection — softmax scale is already folded into wq / bq.
    q = (jnp.dot(x_mm, wq_ref[...], preferred_element_type=jnp.float32)
         + bq_ref[...])                            # (N, C) f32

    # Token reduction (AvgPool1d over the sequence) + folded eval-mode BN.
    # pool is a constant (Nk, N) matrix built in the wrapper (resident input).
    if sr_ratio > 1:
        x_sr = jnp.dot(pool_ref[...], x_mm,
                       preferred_element_type=jnp.float32)          # (Nk, C)
        x_sr = x_sr * bn_s_ref[...] + bn_b_ref[...]
    else:
        x_sr = x

    # Fused K|V projection -> (Nk, 2C) lane-dense output.
    kv = (jnp.dot(x_sr.astype(mm_dtype), wkv_ref[...],
                  preferred_element_type=jnp.float32) + bkv_ref[...])

    approx = mm_dtype != jnp.float32   # exact reciprocal in the f32 path
    out = None
    for h in range(num_heads):         # num_heads is small & static -> unroll
        lo = h * head_dim
        qh = q[:, lo:lo + head_dim].astype(mm_dtype)            # (N, d)
        kh = kv[:, lo:lo + head_dim].astype(mm_dtype)           # (Nk, d)
        vh = kv[:, C + lo:C + lo + head_dim].astype(mm_dtype)   # (Nk, d)

        logits = jnp.dot(qh, kh.T, preferred_element_type=jnp.float32)
        m = jnp.max(logits, axis=-1, keepdims=True)
        e = jnp.exp(logits - m)
        denom = jnp.sum(e, axis=-1, keepdims=True)
        p = e * pl.reciprocal(denom, approx=approx)             # (N, Nk) f32

        ctx_h = jnp.dot(p.astype(mm_dtype), vh,
                        preferred_element_type=jnp.float32)     # (N, d)
        # Accumulate the output projection per head (no concat / relayout).
        contrib = jnp.dot(ctx_h.astype(mm_dtype),
                          wp_ref[lo:lo + head_dim, :],
                          preferred_element_type=jnp.float32)   # (N, out_dim)
        out = contrib if out is None else out + contrib

    out = out + bp_ref[...]
    o_ref[0] = out.astype(o_ref.dtype)


def e_mhsa_pallas(x, params, *, num_heads, head_dim, sr_ratio,
                  mm_dtype=jnp.bfloat16):
    B, N, C = x.shape
    out_dim = params["wp"].shape[1]
    r2 = sr_ratio * sr_ratio
    assert N % r2 == 0, "sequence length must be divisible by sr_ratio**2"
    scale = head_dim ** (-0.5)
    f32 = jnp.float32

    # Fold the softmax scale into the q projection (free at runtime).
    wq = (params["wq"] * scale).astype(mm_dtype)
    bq = (params["bq"] * scale).astype(f32)
    # Fuse K and V into a single (C, 2C) projection.
    wkv = jnp.concatenate([params["wk"], params["wv"]], axis=1).astype(mm_dtype)
    bkv = jnp.concatenate([params["bk"], params["bv"]], axis=1).astype(f32)
    wp = params["wp"].astype(mm_dtype)
    bp = params["bp"].astype(f32)

    kernel = partial(_emhsa_kernel, num_heads=num_heads, head_dim=head_dim,
                     sr_ratio=sr_ratio, mm_dtype=mm_dtype)

    def rep2d(shape):
        # Same block for every grid step -> stays resident in VMEM.
        return pl.BlockSpec(shape, lambda b: (0, 0))

    args = [x]
    in_specs = [pl.BlockSpec((1, N, C), lambda b: (b, 0, 0))]
    if r2 > 1:
        Nk = N // r2
        # Constant average-pool matrix, built once at trace time.
        pool = jnp.repeat(jnp.eye(Nk, dtype=f32), r2, axis=1) * (1.0 / r2)
        args.append(pool.astype(mm_dtype))
        in_specs.append(rep2d((Nk, N)))
    args += [wq, bq, wkv, bkv, wp, bp]
    in_specs += [rep2d((C, C)), rep2d((1, C)),
                 rep2d((C, 2 * C)), rep2d((1, 2 * C)),
                 rep2d((C, out_dim)), rep2d((1, out_dim))]
    if r2 > 1:
        args += [params["bn_scale"].astype(f32), params["bn_shift"].astype(f32)]
        in_specs += [rep2d((1, C)), rep2d((1, C))]

    return pl.pallas_call(
        kernel,
        out_shape=jax.ShapeDtypeStruct((B, N, out_dim), x.dtype),
        grid=(B,),
        in_specs=in_specs,
        out_specs=pl.BlockSpec((1, N, out_dim), lambda b: (b, 0, 0)),
        compiler_params=pltpu.CompilerParams(
            dimension_semantics=("parallel",),
            vmem_limit_bytes=32 * 1024 * 1024),
    )(*args)


def e_mhsa_ref(x, params, *, num_heads, head_dim, sr_ratio):
    """Pure-JAX reference mirroring the PyTorch forward (BN in eval mode)."""
    B, N, C = x.shape
    r2 = sr_ratio * sr_ratio
    q = x @ params["wq"] + params["bq"]
    if r2 > 1:
        x_ = x.reshape(B, N // r2, r2, C).mean(axis=2)
        x_ = x_ * params["bn_scale"] + params["bn_shift"]
    else:
        x_ = x
    Nk = x_.shape[1]
    k = x_ @ params["wk"] + params["bk"]
    v = x_ @ params["wv"] + params["bv"]
    q = q.reshape(B, N, num_heads, head_dim).transpose(0, 2, 1, 3)
    k = k.reshape(B, Nk, num_heads, head_dim).transpose(0, 2, 3, 1)
    v = v.reshape(B, Nk, num_heads, head_dim).transpose(0, 2, 1, 3)
    attn = jax.nn.softmax((q @ k) * head_dim ** (-0.5), axis=-1)
    o = (attn @ v).transpose(0, 2, 1, 3).reshape(B, N, C)
    return o @ params["wp"] + params["bp"]


def make_params(key, dim, out_dim, sr_ratio):
    ks = jax.random.split(key, 12)
    f32 = jnp.float32
    p = {
        # stored as (in, out): y = x @ W + b
        "wq": 0.05 * jax.random.normal(ks[0], (dim, dim), f32),
        "bq": 0.02 * jax.random.normal(ks[1], (1, dim), f32),
        "wk": 0.05 * jax.random.normal(ks[2], (dim, dim), f32),
        "bk": 0.02 * jax.random.normal(ks[3], (1, dim), f32),
        "wv": 0.05 * jax.random.normal(ks[4], (dim, dim), f32),
        "bv": 0.02 * jax.random.normal(ks[5], (1, dim), f32),
        "wp": 0.05 * jax.random.normal(ks[6], (dim, out_dim), f32),
        "bp": 0.02 * jax.random.normal(ks[7], (1, out_dim), f32),
    }
    if sr_ratio > 1:
        gamma = 1.0 + 0.1 * jax.random.normal(ks[8], (dim,), f32)
        beta = 0.1 * jax.random.normal(ks[9], (dim,), f32)
        r_mean = 0.05 * jax.random.normal(ks[10], (dim,), f32)
        r_var = 1.0 + 0.1 * jnp.abs(jax.random.normal(ks[11], (dim,), f32))
        scale = gamma / jnp.sqrt(r_var + NORM_EPS)
        shift = beta - r_mean * scale
        p["bn_scale"] = scale.reshape(1, dim)
        p["bn_shift"] = shift.reshape(1, dim)
    else:
        p["bn_scale"] = jnp.ones((1, dim), f32)
        p["bn_shift"] = jnp.zeros((1, dim), f32)
    return p


if __name__ == "__main__":
    # Small, module-consistent shapes: dim=64, head_dim=32 -> 2 heads,
    # spatial 8x8 -> N=64 tokens, batch=2, sr_ratio=2 -> pooled seq len 16.
    B, N, dim = 2, 64, 64
    head_dim = 32
    num_heads = dim // head_dim
    sr_ratio = 2
    out_dim = dim

    key = jax.random.PRNGKey(0)
    kx, kp = jax.random.split(key)
    x = jax.random.normal(kx, (B, N, dim), jnp.float32)
    params = make_params(kp, dim, out_dim, sr_ratio)

    ref = e_mhsa_ref(x, params, num_heads=num_heads,
                     head_dim=head_dim, sr_ratio=sr_ratio)

    # Exact (f32-MXU-input) path: must match the reference tightly.
    out_f32 = e_mhsa_pallas(x, params, num_heads=num_heads, head_dim=head_dim,
                            sr_ratio=sr_ratio, mm_dtype=jnp.float32)
    out_f32 = jax.block_until_ready(out_f32)
    assert out_f32.shape == (B, N, out_dim)
    assert jnp.allclose(out_f32, ref, atol=1e-4, rtol=1e-4), (
        float(jnp.max(jnp.abs(out_f32 - ref))))

    # Fast (bf16-MXU-input, f32-accumulate) path: bf16 operand rounding moves
    # the achievable tolerance to ~1e-2 vs the f32 reference.
    out_bf16 = e_mhsa_pallas(x, params, num_heads=num_heads, head_dim=head_dim,
                             sr_ratio=sr_ratio, mm_dtype=jnp.bfloat16)
    out_bf16 = jax.block_until_ready(out_bf16)
    assert out_bf16.shape == (B, N, out_dim)
    assert jnp.allclose(out_bf16, ref, atol=2e-2, rtol=2e-2), (
        float(jnp.max(jnp.abs(out_bf16 - ref))))

    print("KERNEL_OK")
</pallas_src>

<mosaic_0001>
module attributes {stable_mosaic.version = 11 : i64} {
  func.func @_emhsa_kernel(%arg0: i32, %arg1: memref<1x64x64xf32, #tpu.memory_space<vmem>>, %arg2: memref<16x64xf32, #tpu.memory_space<vmem>>, %arg3: memref<64x64xf32, #tpu.memory_space<vmem>>, %arg4: memref<1x64xf32, #tpu.memory_space<vmem>>, %arg5: memref<64x128xf32, #tpu.memory_space<vmem>>, %arg6: memref<1x128xf32, #tpu.memory_space<vmem>>, %arg7: memref<64x64xf32, #tpu.memory_space<vmem>>, %arg8: memref<1x64xf32, #tpu.memory_space<vmem>>, %arg9: memref<1x64xf32, #tpu.memory_space<vmem>>, %arg10: memref<1x64xf32, #tpu.memory_space<vmem>>, %arg11: memref<1x64x64xf32, #tpu.memory_space<vmem>>) attributes {dimension_semantics = [#tpu.dimension_semantics<parallel>], iteration_bounds = array<i64: 2>, scalar_prefetch = 0 : i64, scratch_operands = 0 : i64, tpu.core_type = #tpu.core_type<tc>, window_params = [{transform_indices = @transform_0, window_bounds = array<i64: 1, 64, 64>}, {pipeline_mode = #tpu.pipeline_mode<synchronous>, transform_indices = @transform_1, window_bounds = array<i64: 16, 64>}, {pipeline_mode = #tpu.pipeline_mode<synchronous>, transform_indices = @transform_2, window_bounds = array<i64: 64, 64>}, {pipeline_mode = #tpu.pipeline_mode<synchronous>, transform_indices = @transform_3, window_bounds = array<i64: 1, 64>}, {pipeline_mode = #tpu.pipeline_mode<synchronous>, transform_indices = @transform_4, window_bounds = array<i64: 64, 128>}, {pipeline_mode = #tpu.pipeline_mode<synchronous>, transform_indices = @transform_5, window_bounds = array<i64: 1, 128>}, {pipeline_mode = #tpu.pipeline_mode<synchronous>, transform_indices = @transform_6, window_bounds = array<i64: 64, 64>}, {pipeline_mode = #tpu.pipeline_mode<synchronous>, transform_indices = @transform_7, window_bounds = array<i64: 1, 64>}, {pipeline_mode = #tpu.pipeline_mode<synchronous>, transform_indices = @transform_8, window_bounds = array<i64: 1, 64>}, {pipeline_mode = #tpu.pipeline_mode<synchronous>, transform_indices = @transform_9, window_bounds = array<i64: 1, 64>}, {transform_indices = @transform_10, window_bounds = array<i64: 1, 64, 64>}]} {
    %c0 = arith.constant 0 : index
    %c0_0 = arith.constant 0 : index
    %c0_1 = arith.constant 0 : index
    %0 = vector.load %arg1[%c0, %c0_0, %c0_1] : memref<1x64x64xf32, #tpu.memory_space<vmem>>, vector<1x64x64xf32>
    %1 = vector.shape_cast %0 : vector<1x64x64xf32> to vector<64x64xf32>
    %c0_2 = arith.constant 0 : index
    %c0_3 = arith.constant 0 : index
    %2 = vector.load %arg3[%c0_2, %c0_3] : memref<64x64xf32, #tpu.memory_space<vmem>>, vector<64x64xf32>
    %cst = arith.constant dense<0.000000e+00> : vector<64x64xf32>
    %3 = tpu.matmul %1, %2, %cst {dimension_numbers = #tpu.dot_dimension_numbers<[1], [0], [0], [1], [0, 0, 1, 1], [], []>} : vector<64x64xf32>, vector<64x64xf32>, vector<64x64xf32> -> vector<64x64xf32>
    %c0_4 = arith.constant 0 : index
    %c0_5 = arith.constant 0 : index
    %4 = vector.load %arg4[%c0_4, %c0_5] : memref<1x64xf32, #tpu.memory_space<vmem>>, vector<1x64xf32>
    %5 = vector.broadcast %4 : vector<1x64xf32> to vector<64x64xf32>
    %6 = arith.addf %3, %5 : vector<64x64xf32>
    %c0_6 = arith.constant 0 : index
    %c0_7 = arith.constant 0 : index
    %7 = vector.load %arg2[%c0_6, %c0_7] : memref<16x64xf32, #tpu.memory_space<vmem>>, vector<16x64xf32>
    %cst_8 = arith.constant dense<0.000000e+00> : vector<16x64xf32>
    %8 = tpu.matmul %7, %1, %cst_8 {dimension_numbers = #tpu.dot_dimension_numbers<[1], [0], [0], [1], [0, 0, 1, 1], [], []>} : vector<16x64xf32>, vector<64x64xf32>, vector<16x64xf32> -> vector<16x64xf32>
    %c0_9 = arith.constant 0 : index
    %c0_10 = arith.constant 0 : index
    %9 = vector.load %arg9[%c0_9, %c0_10] : memref<1x64xf32, #tpu.memory_space<vmem>>, vector<1x64xf32>
    %10 = vector.broadcast %9 : vector<1x64xf32> to vector<16x64xf32>
    %11 = arith.mulf %8, %10 : vector<16x64xf32>
    %c0_11 = arith.constant 0 : index
    %c0_12 = arith.constant 0 : index
    %12 = vector.load %arg10[%c0_11, %c0_12] : memref<1x64xf32, #tpu.memory_space<vmem>>, vector<1x64xf32>
    %13 = vector.broadcast %12 : vector<1x64xf32> to vector<16x64xf32>
    %14 = arith.addf %11, %13 : vector<16x64xf32>
    %c0_13 = arith.constant 0 : index
    %c0_14 = arith.constant 0 : index
    %15 = vector.load %arg5[%c0_13, %c0_14] : memref<64x128xf32, #tpu.memory_space<vmem>>, vector<64x128xf32>
    %cst_15 = arith.constant dense<0.000000e+00> : vector<16x128xf32>
    %16 = tpu.matmul %14, %15, %cst_15 {dimension_numbers = #tpu.dot_dimension_numbers<[1], [0], [0], [1], [0, 0, 1, 1], [], []>} : vector<16x64xf32>, vector<64x128xf32>, vector<16x128xf32> -> vector<16x128xf32>
    %c0_16 = arith.constant 0 : index
    %c0_17 = arith.constant 0 : index
    %17 = vector.load %arg6[%c0_16, %c0_17] : memref<1x128xf32, #tpu.memory_space<vmem>>, vector<1x128xf32>
    %18 = vector.broadcast %17 : vector<1x128xf32> to vector<16x128xf32>
    %19 = arith.addf %16, %18 : vector<16x128xf32>
    %20 = vector.extract_strided_slice %6 {offsets = [0, 0], sizes = [64, 32], strides = [1, 1]} : vector<64x64xf32> to vector<64x32xf32>
    %21 = vector.extract_strided_slice %19 {offsets = [0, 0], sizes = [16, 32], strides = [1, 1]} : vector<16x128xf32> to vector<16x32xf32>
    %22 = vector.extract_strided_slice %19 {offsets = [0, 64], sizes = [16, 32], strides = [1, 1]} : vector<16x128xf32> to vector<16x32xf32>
    %23 = tpu.transpose %21, [1, 0] : vector<16x32xf32> -> vector<32x16xf32>
    %cst_18 = arith.constant dense<0.000000e+00> : vector<64x16xf32>
    %24 = tpu.matmul %20, %23, %cst_18 {dimension_numbers = #tpu.dot_dimension_numbers<[1], [0], [0], [1], [0, 0, 1, 1], [], []>} : vector<64x32xf32>, vector<32x16xf32>, vector<64x16xf32> -> vector<64x16xf32>
    %cst_19 = arith.constant dense<0xFF800000> : vector<64xf32>
    %25 = vector.multi_reduction <maximumf>, %24, %cst_19 [1] : vector<64x16xf32> to vector<64xf32>
    %26 = vector.shape_cast %25 : vector<64xf32> to vector<64x1xf32>
    %27 = vector.broadcast %26 : vector<64x1xf32> to vector<64x16xf32>
    %28 = arith.subf %24, %27 : vector<64x16xf32>
    %29 = math.exp %28 : vector<64x16xf32>
    %cst_20 = arith.constant dense<0.000000e+00> : vector<64xf32>
    %30 = vector.multi_reduction <add>, %29, %cst_20 [1] : vector<64x16xf32> to vector<64xf32>
    %31 = vector.shape_cast %30 : vector<64xf32> to vector<64x1xf32>
    %32 = tpu.reciprocal %31 : vector<64x1xf32> -> vector<64x1xf32>
    %33 = vector.broadcast %32 : vector<64x1xf32> to vector<64x16xf32>
    %34 = arith.mulf %29, %33 : vector<64x16xf32>
    %cst_21 = arith.constant dense<0.000000e+00> : vector<64x32xf32>
    %35 = tpu.matmul %34, %22, %cst_21 {dimension_numbers = #tpu.dot_dimension_numbers<[1], [0], [0], [1], [0, 0, 1, 1], [], []>} : vector<64x16xf32>, vector<16x32xf32>, vector<64x32xf32> -> vector<64x32xf32>
    %c0_22 = arith.constant 0 : index
    %c0_23 = arith.constant 0 : index
    %36 = vector.load %arg7[%c0_22, %c0_23] : memref<64x64xf32, #tpu.memory_space<vmem>>, vector<32x64xf32>
    %cst_24 = arith.constant dense<0.000000e+00> : vector<64x64xf32>
    %37 = tpu.matmul %35, %36, %cst_24 {dimension_numbers = #tpu.dot_dimension_numbers<[1], [0], [0], [1], [0, 0, 1, 1], [], []>} : vector<64x32xf32>, vector<32x64xf32>, vector<64x64xf32> -> vector<64x64xf32>
    %38 = vector.extract_strided_slice %6 {offsets = [0, 32], sizes = [64, 32], strides = [1, 1]} : vector<64x64xf32> to vector<64x32xf32>
    %39 = vector.extract_strided_slice %19 {offsets = [0, 32], sizes = [16, 32], strides = [1, 1]} : vector<16x128xf32> to vector<16x32xf32>
    %40 = vector.extract_strided_slice %19 {offsets = [0, 96], sizes = [16, 32], strides = [1, 1]} : vector<16x128xf32> to vector<16x32xf32>
    %41 = tpu.transpose %39, [1, 0] : vector<16x32xf32> -> vector<32x16xf32>
    %cst_25 = arith.constant dense<0.000000e+00> : vector<64x16xf32>
    %42 = tpu.matmul %38, %41, %cst_25 {dimension_numbers = #tpu.dot_dimension_numbers<[1], [0], [0], [1], [0, 0, 1, 1], [], []>} : vector<64x32xf32>, vector<32x16xf32>, vector<64x16xf32> -> vector<64x16xf32>
    %cst_26 = arith.constant dense<0xFF800000> : vector<64xf32>
    %43 = vector.multi_reduction <maximumf>, %42, %cst_26 [1] : vector<64x16xf32> to vector<64xf32>
    %44 = vector.shape_cast %43 : vector<64xf32> to vector<64x1xf32>
    %45 = vector.broadcast %44 : vector<64x1xf32> to vector<64x16xf32>
    %46 = arith.subf %42, %45 : vector<64x16xf32>
    %47 = math.exp %46 : vector<64x16xf32>
    %cst_27 = arith.constant dense<0.000000e+00> : vector<64xf32>
    %48 = vector.multi_reduction <add>, %47, %cst_27 [1] : vector<64x16xf32> to vector<64xf32>
    %49 = vector.shape_cast %48 : vector<64xf32> to vector<64x1xf32>
    %50 = tpu.reciprocal %49 : vector<64x1xf32> -> vector<64x1xf32>
    %51 = vector.broadcast %50 : vector<64x1xf32> to vector<64x16xf32>
    %52 = arith.mulf %47, %51 : vector<64x16xf32>
    %cst_28 = arith.constant dense<0.000000e+00> : vector<64x32xf32>
    %53 = tpu.matmul %52, %40, %cst_28 {dimension_numbers = #tpu.dot_dimension_numbers<[1], [0], [0], [1], [0, 0, 1, 1], [], []>} : vector<64x16xf32>, vector<16x32xf32>, vector<64x32xf32> -> vector<64x32xf32>
    %c32 = arith.constant 32 : index
    %c0_29 = arith.constant 0 : index
    %54 = vector.load %arg7[%c32, %c0_29] : memref<64x64xf32, #tpu.memory_space<vmem>>, vector<32x64xf32>
    %cst_30 = arith.constant dense<0.000000e+00> : vector<64x64xf32>
    %55 = tpu.matmul %53, %54, %cst_30 {dimension_numbers = #tpu.dot_dimension_numbers<[1], [0], [0], [1], [0, 0, 1, 1], [], []>} : vector<64x32xf32>, vector<32x64xf32>, vector<64x64xf32> -> vector<64x64xf32>
    %56 = arith.addf %37, %55 : vector<64x64xf32>
    %c0_31 = arith.constant 0 : index
    %c0_32 = arith.constant 0 : index
    %57 = vector.load %arg8[%c0_31, %c0_32] : memref<1x64xf32, #tpu.memory_space<vmem>>, vector<1x64xf32>
    %58 = vector.broadcast %57 : vector<1x64xf32> to vector<64x64xf32>
    %59 = arith.addf %56, %58 : vector<64x64xf32>
    %c0_33 = arith.constant 0 : index
    %c0_34 = arith.constant 0 : index
    %c0_35 = arith.constant 0 : index
    %60 = vector.load %arg11[%c0_33, %c0_34, %c0_35] : memref<1x64x64xf32, #tpu.memory_space<vmem>>, vector<1x64x64xf32>
    %61 = vector.shape_cast %60 : vector<1x64x64xf32> to vector<64x64xf32>
    %62 = vector.shape_cast %59 : vector<64x64xf32> to vector<1x64x64xf32>
    tpu.vector_store %arg11[%c0_33, %c0_34, %c0_35], %62 {strides = array<i32>} : memref<1x64x64xf32, #tpu.memory_space<vmem>>, vector<1x64x64xf32>,
    return
  }
  func.func @transform_0(%arg0: i32) -> (i32, i32, i32) {
    %c0_i32 = arith.constant 0 : i32
    %c0_i32_0 = arith.constant 0 : i32
    %c0_i32_1 = arith.constant 0 : i32
    return %arg0, %c0_i32, %c0_i32_0 : i32, i32, i32
  }
  func.func @transform_1(%arg0: i32) -> (i32, i32) {
    %c0_i32 = arith.constant 0 : i32
    %c0_i32_0 = arith.constant 0 : i32
    %c0_i32_1 = arith.constant 0 : i32
    return %c0_i32, %c0_i32_0 : i32, i32
  }
  func.func @transform_2(%arg0: i32) -> (i32, i32) {
    %c0_i32 = arith.constant 0 : i32
    %c0_i32_0 = arith.constant 0 : i32
    %c0_i32_1 = arith.constant 0 : i32
    return %c0_i32, %c0_i32_0 : i32, i32
  }
  func.func @transform_3(%arg0: i32) -> (i32, i32) {
    %c0_i32 = arith.constant 0 : i32
    %c0_i32_0 = arith.constant 0 : i32
    %c0_i32_1 = arith.constant 0 : i32
    return %c0_i32, %c0_i32_0 : i32, i32
  }
  func.func @transform_4(%arg0: i32) -> (i32, i32) {
    %c0_i32 = arith.constant 0 : i32
    %c0_i32_0 = arith.constant 0 : i32
    %c0_i32_1 = arith.constant 0 : i32
    return %c0_i32, %c0_i32_0 : i32, i32
  }
  func.func @transform_5(%arg0: i32) -> (i32, i32) {
    %c0_i32 = arith.constant 0 : i32
    %c0_i32_0 = arith.constant 0 : i32
    %c0_i32_1 = arith.constant 0 : i32
    return %c0_i32, %c0_i32_0 : i32, i32
  }
  func.func @transform_6(%arg0: i32) -> (i32, i32) {
    %c0_i32 = arith.constant 0 : i32
    %c0_i32_0 = arith.constant 0 : i32
    %c0_i32_1 = arith.constant 0 : i32
    return %c0_i32, %c0_i32_0 : i32, i32
  }
  func.func @transform_7(%arg0: i32) -> (i32, i32) {
    %c0_i32 = arith.constant 0 : i32
    %c0_i32_0 = arith.constant 0 : i32
    %c0_i32_1 = arith.constant 0 : i32
    return %c0_i32, %c0_i32_0 : i32, i32
  }
  func.func @transform_8(%arg0: i32) -> (i32, i32) {
    %c0_i32 = arith.constant 0 : i32
    %c0_i32_0 = arith.constant 0 : i32
    %c0_i32_1 = arith.constant 0 : i32
    return %c0_i32, %c0_i32_0 : i32, i32
  }
  func.func @transform_9(%arg0: i32) -> (i32, i32) {
    %c0_i32 = arith.constant 0 : i32
    %c0_i32_0 = arith.constant 0 : i32
    %c0_i32_1 = arith.constant 0 : i32
    return %c0_i32, %c0_i32_0 : i32, i32
  }
  func.func @transform_10(%arg0: i32) -> (i32, i32, i32) {
    %c0_i32 = arith.constant 0 : i32
    %c0_i32_0 = arith.constant 0 : i32
    %c0_i32_1 = arith.constant 0 : i32
    return %arg0, %c0_i32, %c0_i32_0 : i32, i32, i32
  }
}

</mosaic_0001>

<llo_original>
// kernel: tpu_custom_call.1
$region0: #{tpu_custom_call.1}
  #allocation0 [shape = 'u32[]', space=smem, size = 0x4, offset = 0x4, fixed_abs, tag = 'smem constant byte address 0x4 - core index']
  #allocation1 [shape = 'u32[72,128]{1,0:T(1,128)}', space=vmem, size = 0x9000, scoped, tag = 'internal scratch']
  %s0 = inlined_call_operand.hbm [shape: f32[2,64,64], index: 0, kind: input, shape index: {}]
  %s1 = inlined_call_operand.hbm [shape: f32[16,64], index: 1, kind: input, shape index: {}]
  %s2 = inlined_call_operand.hbm [shape: f32[64,64], index: 2, kind: input, shape index: {}]
  %s3 = inlined_call_operand.vmem [shape: f32[1,64], index: 3, kind: input, shape index: {}]
  %s4 = inlined_call_operand.hbm [shape: f32[64,128], index: 4, kind: input, shape index: {}]
  %s5 = inlined_call_operand.vmem [shape: f32[1,128], index: 5, kind: input, shape index: {}]
  %s6 = inlined_call_operand.hbm [shape: f32[64,64], index: 6, kind: input, shape index: {}]
  %s7 = inlined_call_operand.vmem [shape: f32[1,64], index: 7, kind: input, shape index: {}]
  %s8 = inlined_call_operand.vmem [shape: f32[1,64], index: 8, kind: input, shape index: {}]
  %s9 = inlined_call_operand.vmem [shape: f32[1,64], index: 9, kind: input, shape index: {}]
  %s10 = inlined_call_operand.hbm [shape: f32[2,64,64], index: 10, kind: output, shape index: {}]
  %s11 = sld [smem:[#allocation0]]
  $region93: #{tpu_custom_call.1} parent=0
    _
  %s13 = ssub.s32 1, %s11
  %s14 = scalar_select 0, %s13, %s11
  $region1: #{tpu_custom_call.1} parent=0
    #allocation2 [shape = 'u8[65536]{0}', space=vmem, size = 0x10000, scoped, tag = 'input window, operand 0']
    #allocation3 [shape = 's32[2]{0}', space=sflag, size = 0x8, scoped, tag = 'scoped memory for tpu_custom_call.1']
    #allocation4 [shape = 's32[2]{0}', space=sflag, size = 0x8, scoped, tag = 'scoped memory for tpu_custom_call.1']
    #allocation5 [shape = 'u8[8192]{0}', space=vmem, size = 0x2000, scoped, tag = 'input window, operand 1, single buffered']
    #allocation6 [shape = 's32[1]{0}', space=sflag, size = 0x4, scoped, tag = 'scoped memory for tpu_custom_call.1']
    #allocation7 [shape = 'u8[32768]{0}', space=vmem, size = 0x8000, scoped, tag = 'input window, operand 2, single buffered']
    #allocation8 [shape = 'u8[32768]{0}', space=vmem, size = 0x8000, scoped, tag = 'input window, operand 4, single buffered']
    #allocation9 [shape = 's32[1]{0}', space=sflag, size = 0x4, scoped, tag = 'scoped memory for tpu_custom_call.1']
    #allocation10 [shape = 'u8[32768]{0}', space=vmem, size = 0x8000, scoped, tag = 'input window, operand 6, single buffered']
    #allocation11 [shape = 'u8[65536]{0}', space=vmem, size = 0x10000, scoped, tag = 'output window, operand 0']
    %15 = vsyncpa [#allocation3], 0
    %s16 = scalar_lea.sflag [#allocation3], 1
    %17 = vsyncpa %s16, 0
    %18 = vsyncpa [#allocation6], 0
    %19 = vsyncpa [#allocation9], 0
    %20 = vsyncpa [#allocation4], 0
    %s21 = scalar_lea.sflag [#allocation4], 1
    %22 = vsyncpa %s21, 0
    loop: start=0, step=1, limit=4
    $region2: #{tpu_custom_call.1} parent=1 // loop_pre_header
      _
    $region3: #{tpu_custom_call.1} parent=1 // loop_header
      %s24 = sphi 0, %s28
      %p25 = scmp.ge.s32.totalorder %s24, 4
      %s34 = sphi 0, %s36
      %s37 = sphi 0, %s34
      %s38 = sphi 0, %s37
      %s54 = sphi 0, %s38
      %s58 = sphi 0, %s58
      %s60 = sphi 0, %s58
      %s61 = sphi 0, %s60
      %s75 = sphi 0, %s61
      %s79 = sphi 0, %s79
      %s81 = sphi 0, %s79
      %s82 = sphi 0, %s81
      %s96 = sphi 0, %s82
      %s100 = sphi 0, %s100
      %s102 = sphi 0, %s100
      %s103 = sphi 0, %s102
      %s117 = sphi 0, %s103
      %s121 = sphi 0, %s121
      %s123 = sphi 0, %s121
      %s124 = sphi 0, %s123
      %s138 = sphi 0, %s124
      %s142 = sphi 0, %s142
      %s144 = sphi 0, %s142
      %s145 = sphi 0, %s144
      %s159 = sphi 0, %s145
      %s163 = sphi 0, %s163
      %s165 = sphi 0, %s163
      %s166 = sphi 0, %s165
      %s180 = sphi 0, %s166
      %s184 = sphi 0, %s184
      %s186 = sphi 0, %s184
      %s187 = sphi 0, %s186
      %s201 = sphi 0, %s187
      %s205 = sphi 0, %s205
      %s207 = sphi 0, %s205
      %s208 = sphi 0, %s207
      %s222 = sphi 0, %s208
      %s226 = sphi 0, %s226
      %s228 = sphi 0, %s226
      %s229 = sphi 0, %s228
      %s243 = sphi 0, %s229
      %s249 = sphi 0, %s251
      %s252 = sphi 0, %s249
      %s253 = sphi 0, %s252
      %s269 = sphi 0, %s253
    $region4: #{tpu_custom_call.1} parent=1 // loop_header_branch
      %27 = sbr.rel (%p25) target = $region8
    $region5: #{tpu_custom_call.1} parent=1 // loop_body
      %s29 = ssub.s32 %s24, 1
      %s30 = ssub.s32 %s24, 2
      %s31 = sadd.s32 %s24, 1
      %s32 = ssub.s32 %s24, %s31
      %p33 = scmp.eq.s32.totalorder %s32, 0
      %s35 = sadd.s32 %s34, 1
      %s36 = scalar_select %p33, %s34, %s35
      %p39 = pneg %p33
      %p40 = scmp.eq.s32.totalorder %s24, 1
      %p41 = por %p39, %p40
      %p42 = scmp.ne.s32.totalorder %s34, %s37
      %p43 = scmp.eq.s32.totalorder %s24, 0
      %p44 = por %p42, %p43
      %p45 = scmp.ne.s32.totalorder %s34, %s37
      %p46 = scmp.eq.s32.totalorder %s29, 1
      %p47 = por %p45, %p46
      %p48 = scmp.ne.s32.totalorder %s37, %s38
      %p49 = scmp.eq.s32.totalorder %s29, 0
      %p50 = por %p48, %p49
      %p51 = scmp.ne.s32.totalorder %s37, %s38
      %p52 = scmp.eq.s32.totalorder %s30, 1
      %p53 = por %p51, %p52
      %p55 = scmp.ne.s32.totalorder %s38, %s54
      %p56 = scmp.eq.s32.totalorder %s30, 0
      %p57 = por %p55, %p56
      %s59 = sadd.s32 %s58, 1
      %p62 = scmp.eq.s32.totalorder %s24, 1
      %p63 = scmp.ne.s32.totalorder %s58, %s60
      %p64 = scmp.eq.s32.totalorder %s24, 0
      %p65 = por %p63, %p64
      %p66 = scmp.ne.s32.totalorder %s58, %s60
      %p67 = scmp.eq.s32.totalorder %s29, 1
      %p68 = por %p66, %p67
      %p69 = scmp.ne.s32.totalorder %s60, %s61
      %p70 = scmp.eq.s32.totalorder %s29, 0
      %p71 = por %p69, %p70
      %p72 = scmp.ne.s32.totalorder %s60, %s61
      %p73 = scmp.eq.s32.totalorder %s30, 1
      %p74 = por %p72, %p73
      %p76 = scmp.ne.s32.totalorder %s61, %s75
      %p77 = scmp.eq.s32.totalorder %s30, 0
      %p78 = por %p76, %p77
      %s80 = sadd.s32 %s79, 1
      %p83 = scmp.eq.s32.totalorder %s24, 1
      %p84 = scmp.ne.s32.totalorder %s79, %s81
      %p85 = scmp.eq.s32.totalorder %s24, 0
      %p86 = por %p84, %p85
      %p87 = scmp.ne.s32.totalorder %s79, %s81
      %p88 = scmp.eq.s32.totalorder %s29, 1
      %p89 = por %p87, %p88
      %p90 = scmp.ne.s32.totalorder %s81, %s82
      %p91 = scmp.eq.s32.totalorder %s29, 0
      %p92 = por %p90, %p91
      %p93 = scmp.ne.s32.totalorder %s81, %s82
      %p94 = scmp.eq.s32.totalorder %s30, 1
      %p95 = por %p93, %p94
      %p97 = scmp.ne.s32.totalorder %s82, %s96
      %p98 = scmp.eq.s32.totalorder %s30, 0
      %p99 = por %p97, %p98
      %s101 = sadd.s32 %s100, 1
      %p104 = scmp.eq.s32.totalorder %s24, 1
      %p105 = scmp.ne.s32.totalorder %s100, %s102
      %p106 = scmp.eq.s32.totalorder %s24, 0
      %p107 = por %p105, %p106
      %p108 = scmp.ne.s32.totalorder %s100, %s102
      %p109 = scmp.eq.s32.totalorder %s29, 1
      %p110 = por %p108, %p109
      %p111 = scmp.ne.s32.totalorder %s102, %s103
      %p112 = scmp.eq.s32.totalorder %s29, 0
      %p113 = por %p111, %p112
      %p114 = scmp.ne.s32.totalorder %s102, %s103
      %p115 = scmp.eq.s32.totalorder %s30, 1
      %p116 = por %p114, %p115
      %p118 = scmp.ne.s32.totalorder %s103, %s117
      %p119 = scmp.eq.s32.totalorder %s30, 0
      %p120 = por %p118, %p119
      %s122 = sadd.s32 %s121, 1
      %p125 = scmp.eq.s32.totalorder %s24, 1
      %p126 = scmp.ne.s32.totalorder %s121, %s123
      %p127 = scmp.eq.s32.totalorder %s24, 0
      %p128 = por %p126, %p127
      %p129 = scmp.ne.s32.totalorder %s121, %s123
      %p130 = scmp.eq.s32.totalorder %s29, 1
      %p131 = por %p129, %p130
      %p132 = scmp.ne.s32.totalorder %s123, %s124
      %p133 = scmp.eq.s32.totalorder %s29, 0
      %p134 = por %p132, %p133
      %p135 = scmp.ne.s32.totalorder %s123, %s124
      %p136 = scmp.eq.s32.totalorder %s30, 1
      %p137 = por %p135, %p136
      %p139 = scmp.ne.s32.totalorder %s124, %s138
      %p140 = scmp.eq.s32.totalorder %s30, 0
      %p141 = por %p139, %p140
      %s143 = sadd.s32 %s142, 1
      %p146 = scmp.eq.s32.totalorder %s24, 1
      %p147 = scmp.ne.s32.totalorder %s142, %s144
      %p148 = scmp.eq.s32.totalorder %s24, 0
      %p149 = por %p147, %p148
      %p150 = scmp.ne.s32.totalorder %s142, %s144
      %p151 = scmp.eq.s32.totalorder %s29, 1
      %p152 = por %p150, %p151
      %p153 = scmp.ne.s32.totalorder %s144, %s145
      %p154 = scmp.eq.s32.totalorder %s29, 0
      %p155 = por %p153, %p154
      %p156 = scmp.ne.s32.totalorder %s144, %s145
      %p157 = scmp.eq.s32.totalorder %s30, 1
      %p158 = por %p156, %p157
      %p160 = scmp.ne.s32.totalorder %s145, %s159
      %p161 = scmp.eq.s32.totalorder %s30, 0
      %p162 = por %p160, %p161
      %s164 = sadd.s32 %s163, 1
      %p167 = scmp.eq.s32.totalorder %s24, 1
      %p168 = scmp.ne.s32.totalorder %s163, %s165
      %p169 = scmp.eq.s32.totalorder %s24, 0
      %p170 = por %p168, %p169
      %p171 = scmp.ne.s32.totalorder %s163, %s165
      %p172 = scmp.eq.s32.totalorder %s29, 1
      %p173 = por %p171, %p172
      %p174 = scmp.ne.s32.totalorder %s165, %s166
      %p175 = scmp.eq.s32.totalorder %s29, 0
      %p176 = por %p174, %p175
      %p177 = scmp.ne.s32.totalorder %s165, %s166
      %p178 = scmp.eq.s32.totalorder %s30, 1
      %p179 = por %p177, %p178
      %p181 = scmp.ne.s32.totalorder %s166, %s180
      %p182 = scmp.eq.s32.totalorder %s30, 0
      %p183 = por %p181, %p182
      %s185 = sadd.s32 %s184, 1
      %p188 = scmp.eq.s32.totalorder %s24, 1
      %p189 = scmp.ne.s32.totalorder %s184, %s186
      %p190 = scmp.eq.s32.totalorder %s24, 0
      %p191 = por %p189, %p190
      %p192 = scmp.ne.s32.totalorder %s184, %s186
      %p193 = scmp.eq.s32.totalorder %s29, 1
      %p194 = por %p192, %p193
      %p195 = scmp.ne.s32.totalorder %s186, %s187
      %p196 = scmp.eq.s32.totalorder %s29, 0
      %p197 = por %p195, %p196
      %p198 = scmp.ne.s32.totalorder %s186, %s187
      %p199 = scmp.eq.s32.totalorder %s30, 1
      %p200 = por %p198, %p199
      %p202 = scmp.ne.s32.totalorder %s187, %s201
      %p203 = scmp.eq.s32.totalorder %s30, 0
      %p204 = por %p202, %p203
      %s206 = sadd.s32 %s205, 1
      %p209 = scmp.eq.s32.totalorder %s24, 1
      %p210 = scmp.ne.s32.totalorder %s205, %s207
      %p211 = scmp.eq.s32.totalorder %s24, 0
      %p212 = por %p210, %p211
      %p213 = scmp.ne.s32.totalorder %s205, %s207
      %p214 = scmp.eq.s32.totalorder %s29, 1
      %p215 = por %p213, %p214
      %p216 = scmp.ne.s32.totalorder %s207, %s208
      %p217 = scmp.eq.s32.totalorder %s29, 0
      %p218 = por %p216, %p217
      %p219 = scmp.ne.s32.totalorder %s207, %s208
      %p220 = scmp.eq.s32.totalorder %s30, 1
      %p221 = por %p219, %p220
      %p223 = scmp.ne.s32.totalorder %s208, %s222
      %p224 = scmp.eq.s32.totalorder %s30, 0
      %p225 = por %p223, %p224
      %s227 = sadd.s32 %s226, 1
      %p230 = scmp.eq.s32.totalorder %s24, 1
      %p231 = scmp.ne.s32.totalorder %s226, %s228
      %p232 = scmp.eq.s32.totalorder %s24, 0
      %p233 = por %p231, %p232
      %p234 = scmp.ne.s32.totalorder %s226, %s228
      %p235 = scmp.eq.s32.totalorder %s29, 1
      %p236 = por %p234, %p235
      %p237 = scmp.ne.s32.totalorder %s228, %s229
      %p238 = scmp.eq.s32.totalorder %s29, 0
      %p239 = por %p237, %p238
      %p240 = scmp.ne.s32.totalorder %s228, %s229
      %p241 = scmp.eq.s32.totalorder %s30, 1
      %p242 = por %p240, %p241
      %p244 = scmp.ne.s32.totalorder %s229, %s243
      %p245 = scmp.eq.s32.totalorder %s30, 0
      %p246 = por %p244, %p245
      %s247 = ssub.s32 %s24, %s31
      %p248 = scmp.eq.s32.totalorder %s247, 0
      %s250 = sadd.s32 %s249, 1
      %s251 = scalar_select %p248, %s249, %s250
      %p254 = pneg %p248
      %p255 = scmp.eq.s32.totalorder %s24, 1
      %p256 = por %p254, %p255
      %p257 = scmp.ne.s32.totalorder %s249, %s252
      %p258 = scmp.eq.s32.totalorder %s24, 0
      %p259 = por %p257, %p258
      %p260 = scmp.ne.s32.totalorder %s249, %s252
      %p261 = scmp.eq.s32.totalorder %s29, 1
      %p262 = por %p260, %p261
      %p263 = scmp.ne.s32.totalorder %s252, %s253
      %p264 = scmp.eq.s32.totalorder %s29, 0
      %p265 = por %p263, %p264
      %p266 = scmp.ne.s32.totalorder %s252, %s253
      %p267 = scmp.eq.s32.totalorder %s30, 1
      %p268 = por %p266, %p267
      %p270 = scmp.ne.s32.totalorder %s253, %s269
      %p271 = scmp.eq.s32.totalorder %s30, 0
      %p272 = por %p270, %p271
      %p273 = scmp.le.s32.totalorder 1, %s24
      %p274 = scmp.lt.s32.totalorder %s24, 3
      %p275 = pnand %p273, %p274
      %p276 = pneg %p275
      // Predicated region
      $region9: #{tpu_custom_call.1} parent=5 // pred_check
        _
      $region10: #{tpu_custom_call.1} parent=5 // pred_check_branch
        %278 = sbr.rel (%p275) target = $region12
      $region11: #{tpu_custom_call.1} parent=5 // pred_region
        %s279 = ssub.s32 %s24, 1
        // Predicated region
        $region13: #{tpu_custom_call.1} parent=11 // pred_check
          %p280 = pneg %p71
        $region14: #{tpu_custom_call.1} parent=11 // pred_check_branch
          %282 = sbr.rel (%p280) target = $region16
        $region15: #{tpu_custom_call.1} parent=11 // pred_region
          %284 = vsyncadd [#allocation6], 0
          %s285 = sshll.u32 %s1, 4
          %s286 = int_to_ptr.hbm [resolvable:$true] %s285
          %s287 = sshll.u32 [#allocation5], 4
          %s288 = int_to_ptr.vmem [resolvable:$true] %s287
          %293 = dma.hbm_to_vmem [thread:$0]  %s286, 256, %s288, [#allocation6], 128, 128, 8
        $region16: #{tpu_custom_call.1} parent=11 // pred_fallthru
          _
        // Predicated region
        $region17: #{tpu_custom_call.1} parent=11 // pred_check
          %p294 = pneg %p92
        $region18: #{tpu_custom_call.1} parent=11 // pred_check_branch
          %296 = sbr.rel (%p294) target = $region20
        $region19: #{tpu_custom_call.1} parent=11 // pred_region
          %298 = vsyncadd [#allocation6], 0
          %s299 = sshll.u32 %s2, 4
          %s300 = int_to_ptr.hbm [resolvable:$true] %s299
          %s301 = sshll.u32 [#allocation7], 4
          %s302 = int_to_ptr.vmem [resolvable:$true] %s301
          %307 = dma.hbm_to_vmem [thread:$0]  %s300, 1024, %s302, [#allocation6], 128, 128, 8
        $region20: #{tpu_custom_call.1} parent=11 // pred_fallthru
          _
        // Predicated region
        $region21: #{tpu_custom_call.1} parent=11 // pred_check
          %p308 = pneg %p113
        $region22: #{tpu_custom_call.1} parent=11 // pred_check_branch
          %310 = sbr.rel (%p308) target = $region24
        $region23: #{tpu_custom_call.1} parent=11 // pred_region
          _
        $region24: #{tpu_custom_call.1} parent=11 // pred_fallthru
          _
        // Predicated region
        $region25: #{tpu_custom_call.1} parent=11 // pred_check
          %p311 = pneg %p134
        $region26: #{tpu_custom_call.1} parent=11 // pred_check_branch
          %313 = sbr.rel (%p311) target = $region28
        $region27: #{tpu_custom_call.1} parent=11 // pred_region
          %315 = vsyncadd [#allocation9], 0
          %s316 = sshll.u32 %s4, 4
          %s317 = int_to_ptr.hbm [resolvable:$true] %s316
          %s318 = sshll.u32 [#allocation8], 4
          %s319 = int_to_ptr.vmem [resolvable:$true] %s318
          %324 = dma.hbm_to_vmem [thread:$0]  %s317, 1024, %s319, [#allocation9], 128, 128, 8
        $region28: #{tpu_custom_call.1} parent=11 // pred_fallthru
          _
        // Predicated region
        $region29: #{tpu_custom_call.1} parent=11 // pred_check
          %p325 = pneg %p155
        $region30: #{tpu_custom_call.1} parent=11 // pred_check_branch
          %327 = sbr.rel (%p325) target = $region32
        $region31: #{tpu_custom_call.1} parent=11 // pred_region
          _
        $region32: #{tpu_custom_call.1} parent=11 // pred_fallthru
          _
        // Predicated region
        $region33: #{tpu_custom_call.1} parent=11 // pred_check
          %p328 = pneg %p176
        $region34: #{tpu_custom_call.1} parent=11 // pred_check_branch
          %330 = sbr.rel (%p328) target = $region36
        $region35: #{tpu_custom_call.1} parent=11 // pred_region
          %332 = vsyncadd [#allocation9], 0
          %s333 = sshll.u32 %s6, 4
          %s334 = int_to_ptr.hbm [resolvable:$true] %s333
          %s335 = sshll.u32 [#allocation10], 4
          %s336 = int_to_ptr.vmem [resolvable:$true] %s335
          %341 = dma.hbm_to_vmem [thread:$0]  %s334, 1024, %s336, [#allocation9], 128, 128, 8
        $region36: #{tpu_custom_call.1} parent=11 // pred_fallthru
          _
        // Predicated region
        $region37: #{tpu_custom_call.1} parent=11 // pred_check
          %p342 = pneg %p197
        $region38: #{tpu_custom_call.1} parent=11 // pred_check_branch
          %344 = sbr.rel (%p342) target = $region40
        $region39: #{tpu_custom_call.1} parent=11 // pred_region
          _
        $region40: #{tpu_custom_call.1} parent=11 // pred_fallthru
          _
        // Predicated region
        $region41: #{tpu_custom_call.1} parent=11 // pred_check
          %p345 = pneg %p218
        $region42: #{tpu_custom_call.1} parent=11 // pred_check_branch
          %347 = sbr.rel (%p345) target = $region44
        $region43: #{tpu_custom_call.1} parent=11 // pred_region
          _
        $region44: #{tpu_custom_call.1} parent=11 // pred_fallthru
          _
        // Predicated region
        $region45: #{tpu_custom_call.1} parent=11 // pred_check
          %p348 = pneg %p239
        $region46: #{tpu_custom_call.1} parent=11 // pred_check_branch
          %350 = sbr.rel (%p348) target = $region48
        $region47: #{tpu_custom_call.1} parent=11 // pred_region
          _
        $region48: #{tpu_custom_call.1} parent=11 // pred_fallthru
          _
      $region12: #{tpu_custom_call.1} parent=5 // pred_fallthru
        _
      %p351 = scmp.lt.s32.totalorder %s24, 2
      // Predicated region
      $region49: #{tpu_custom_call.1} parent=5 // pred_check
        %p352 = pneg %p351
      $region50: #{tpu_custom_call.1} parent=5 // pred_check_branch
        %354 = sbr.rel (%p352) target = $region52
      $region51: #{tpu_custom_call.1} parent=5 // pred_region
        // Predicated region
        $region53: #{tpu_custom_call.1} parent=51 // pred_check
          %p355 = pneg %p44
        $region54: #{tpu_custom_call.1} parent=51 // pred_check_branch
          %357 = sbr.rel (%p355) target = $region56
        $region55: #{tpu_custom_call.1} parent=51 // pred_region
          %s358 = sand.u32 %s34, 1
          %s359 = scalar_lea.sflag [#allocation3], %s358
          %s360 = sand.u32 %s34, 1
          %s361 = smul.addr %s360, 64
          %s362 = scalar_lea.vmem [#allocation2], %s361
          %364 = vsyncadd %s359, 0
          %s365 = smul.addr %s24, 8
          %s366 = smul.addr %s365, 8
          %s367 = scalar_lea.hbm %s0, %s366
          %s368 = sshll.u32 %s367, 4
          %s369 = int_to_ptr.hbm [resolvable:$true] %s368
          %s370 = sshll.u32 %s362, 4
          %s371 = int_to_ptr.vmem [resolvable:$true] %s370
          %376 = dma.hbm_to_vmem [thread:$0]  %s369, 1024, %s371, %s359, 128, 128, 8
        $region56: #{tpu_custom_call.1} parent=51 // pred_fallthru
          _
      $region52: #{tpu_custom_call.1} parent=5 // pred_fallthru
        _
      %p377 = scmp.le.s32.totalorder 1, %s24
      %p378 = scmp.lt.s32.totalorder %s24, 3
      %p379 = pnand %p377, %p378
      %p380 = pneg %p379
      // Predicated region
      $region57: #{tpu_custom_call.1} parent=5 // pred_check
        _
      $region58: #{tpu_custom_call.1} parent=5 // pred_check_branch
        %382 = sbr.rel (%p379) target = $region60
      $region59: #{tpu_custom_call.1} parent=5 // pred_region
        %s383 = ssub.s32 %s24, 1
        %s384 = sand.u32 %s37, 1
        %s385 = scalar_lea.sflag [#allocation3], %s384
        %s386 = sand.u32 %s37, 1
        %s387 = smul.addr %s386, 64
        %s388 = scalar_lea.vmem [#allocation2], %s387
        // Predicated region
        $region61: #{tpu_custom_call.1} parent=59 // pred_check
          %p389 = pneg %p50
        $region62: #{tpu_custom_call.1} parent=59 // pred_check_branch
          %391 = sbr.rel (%p389) target = $region64
        $region63: #{tpu_custom_call.1} parent=59 // pred_region
          %393 = dma.done %s385, 1024
        $region64: #{tpu_custom_call.1} parent=59 // pred_fallthru
          _
        // Predicated region
        $region65: #{tpu_custom_call.1} parent=59 // pred_check
          %p394 = pneg %p71
        $region66: #{tpu_custom_call.1} parent=59 // pred_check_branch
          %396 = sbr.rel (%p394) target = $region68
        $region67: #{tpu_custom_call.1} parent=59 // pred_region
          %398 = dma.done [#allocation6], 256
        $region68: #{tpu_custom_call.1} parent=59 // pred_fallthru
          _
        // Predicated region
        $region69: #{tpu_custom_call.1} parent=59 // pred_check
          %p399 = pneg %p92
        $region70: #{tpu_custom_call.1} parent=59 // pred_check_branch
          %401 = sbr.rel (%p399) target = $region72
        $region71: #{tpu_custom_call.1} parent=59 // pred_region
          %403 = dma.done [#allocation6], 1024
        $region72: #{tpu_custom_call.1} parent=59 // pred_fallthru
          _
        // Predicated region
        $region73: #{tpu_custom_call.1} parent=59 // pred_check
          %p404 = pneg %p134
        $region74: #{tpu_custom_call.1} parent=59 // pred_check_branch
          %406 = sbr.rel (%p404) target = $region76
        $region75: #{tpu_custom_call.1} parent=59 // pred_region
          %408 = dma.done [#allocation9], 1024
        $region76: #{tpu_custom_call.1} parent=59 // pred_fallthru
          _
        // Predicated region
        $region77: #{tpu_custom_call.1} parent=59 // pred_check
          %p409 = pneg %p176
        $region78: #{tpu_custom_call.1} parent=59 // pred_check_branch
          %411 = sbr.rel (%p409) target = $region80
        $region79: #{tpu_custom_call.1} parent=59 // pred_region
          %413 = dma.done [#allocation9], 1024
        $region80: #{tpu_custom_call.1} parent=59 // pred_fallthru
          _
        %s414 = sand.u32 %s37, 1
        %s415 = scalar_lea.sflag [#allocation3], %s414
        %s416 = sand.u32 %s37, 1
        %s417 = smul.addr %s416, 64
        %s418 = scalar_lea.vmem [#allocation2], %s417
        %p419 = pneg %p50
        %p420 = pneg %p47
        %p421 = pneg %p71
        %p422 = pneg %p68
        %p423 = pneg %p92
        %p424 = pneg %p89
        %p425 = pneg %p113
        %p426 = pneg %p110
        %p427 = pneg %p134
        %p428 = pneg %p131
        %p429 = pneg %p155
        %p430 = pneg %p152
        %p431 = pneg %p176
        %p432 = pneg %p173
        %p433 = pneg %p197
        %p434 = pneg %p194
        %p435 = pneg %p218
        %p436 = pneg %p215
        %p437 = pneg %p239
        %p438 = pneg %p236
        %p439 = pneg %p265
        %p440 = pneg %p262
        %s441 = sand.u32 %s252, 1
        %s442 = scalar_lea.sflag [#allocation4], %s441
        %s443 = sand.u32 %s252, 1
        %s444 = smul.addr %s443, 64
        %s445 = scalar_lea.vmem [#allocation11], %s444
        %v446 = vld [vmem:[%s388] sm:$0xff]
        %v447 = vld [vmem:[%s388 + $0x8] sm:$0xff]
        %v448 = vld [vmem:[%s388 + $0x10] sm:$0xff]
        %v449 = vld [vmem:[%s388 + $0x18] sm:$0xff]
        %v450 = vld [vmem:[%s388 + $0x20] sm:$0xff]
        %v451 = vld [vmem:[%s388 + $0x28] sm:$0xff]
        %v452 = vld [vmem:[%s388 + $0x30] sm:$0xff]
        %v453 = vld [vmem:[%s388 + $0x38] sm:$0xff]
        %v454 = vld [vmem:[#allocation7] sm:$0xff]
        %v455 = vld [vmem:[#allocation7 + $0x8] sm:$0xff]
        %v456 = vld [vmem:[#allocation7 + $0x10] sm:$0xff]
        %v457 = vld [vmem:[#allocation7 + $0x18] sm:$0xff]
        %v458 = vld [vmem:[#allocation7 + $0x20] sm:$0xff]
        %v459 = vld [vmem:[#allocation7 + $0x28] sm:$0xff]
        %v460 = vld [vmem:[#allocation7 + $0x30] sm:$0xff]
        %v461 = vld [vmem:[#allocation7 + $0x38] sm:$0xff]
        %v462 = vld [vmem:[%s3] sm:$0x1]
        %v464 = vperm.slane %v462, 0
        %vm466 = vcmask 523264
        %v468 = vsel %vm466, %v446, 0
        %v471 = vsel %vm466, %v447, 0
        %v474 = vsel %vm466, %v448, 0
        %v477 = vsel %vm466, %v449, 0
        %v480 = vsel %vm466, %v450, 0
        %v483 = vsel %vm466, %v451, 0
        %v486 = vsel %vm466, %v452, 0
        %v489 = vsel %vm466, %v453, 0
        %491 = vmatpush.msra.mxu0 0.0
        %492 = vmatpush.msra.mxu0 0.0
        %493 = vmatpush.msra.mxu0 0.0
        %494 = vmatpush.msra.mxu0 0.0
        %495 = vmatpush.msra.mxu0 0.0
        %496 = vmatpush.msra.mxu0 0.0
        %497 = vmatpush.msra.mxu0 0.0
        %498 = vmatpush.msra.mxu0 0.0
        %499 = vmatpush.msra.mxu0 %v461
        %500 = vmatpush.msra.mxu0 %v460
        %501 = vmatpush.msra.mxu0 %v459
        %502 = vmatpush.msra.mxu0 %v458
        %503 = vmatpush.msra.mxu0 %v457
        %504 = vmatpush.msra.mxu0 %v456
        %505 = vmatpush.msra.mxu0 %v455
        %506 = vmatpush.msra.mxu0 %v454
        %507 = vmatmul.f32.gmra.mxu0 %v468
        %v508 = vpop.f32.mrf.mxu0
        %v509 = vadd.f32 %v464, %v508
        %510 = vmatmul.f32.gmra.mxu0 %v471
        %v511 = vpop.f32.mrf.mxu0
        %v512 = vadd.f32 %v464, %v511
        %513 = vmatmul.f32.gmra.mxu0 %v474
        %v514 = vpop.f32.mrf.mxu0
        %v515 = vadd.f32 %v464, %v514
        %516 = vmatmul.f32.gmra.mxu0 %v477
        %v517 = vpop.f32.mrf.mxu0
        %v518 = vadd.f32 %v464, %v517
        %519 = vmatmul.f32.gmra.mxu0 %v480
        %v520 = vpop.f32.mrf.mxu0
        %v521 = vadd.f32 %v464, %v520
        %522 = vmatmul.f32.gmra.mxu0 %v483
        %v523 = vpop.f32.mrf.mxu0
        %v524 = vadd.f32 %v464, %v523
        %525 = vmatmul.f32.gmra.mxu0 %v486
        %v526 = vpop.f32.mrf.mxu0
        %v527 = vadd.f32 %v464, %v526
        %528 = vmatmul.f32.gmra.mxu0 %v489
        %v529 = vpop.f32.mrf.mxu0
        %v530 = vadd.f32 %v464, %v529
        %531 = vdwg.mxu0
        %v532 = vld [vmem:[#allocation5] sm:$0xff]
        %v533 = vld [vmem:[#allocation5 + $0x8] sm:$0xff]
        %v535 = vsel %vm466, %v532, 0
        %v538 = vsel %vm466, %v533, 0
        %540 = vmatpush.msra.mxu0 0.0
        %541 = vmatpush.msra.mxu0 0.0
        %542 = vmatpush.msra.mxu0 0.0
        %543 = vmatpush.msra.mxu0 0.0
        %544 = vmatpush.msra.mxu0 0.0
        %545 = vmatpush.msra.mxu0 0.0
        %546 = vmatpush.msra.mxu0 0.0
        %547 = vmatpush.msra.mxu0 0.0
        %548 = vmatpush.msra.mxu0 %v453
        %549 = vmatpush.msra.mxu0 %v452
        %550 = vmatpush.msra.mxu0 %v451
        %551 = vmatpush.msra.mxu0 %v450
        %552 = vmatpush.msra.mxu0 %v449
        %553 = vmatpush.msra.mxu0 %v448
        %554 = vmatpush.msra.mxu0 %v447
        %555 = vmatpush.msra.mxu0 %v446
        %556 = vmatmul.f32.gmra.mxu0 %v535
        %v557 = vpop.f32.mrf.mxu0
        %v558 = vadd.f32 0.0, %v557
        %559 = vmatmul.f32.gmra.mxu0 %v538
        %v560 = vpop.f32.mrf.mxu0
        %v561 = vadd.f32 0.0, %v560
        %562 = vdwg.mxu0
        %v563 = vld [vmem:[%s8] sm:$0x1]
        %v565 = vperm.slane %v563, 0
        %v567 = vmul.f32 %v558, %v565
        %v568 = vmul.f32 %v561, %v565
        %v569 = vld [vmem:[%s9] sm:$0x1]
        %v571 = vperm.slane %v569, 0
        %v573 = vadd.f32 %v567, %v571
        %v574 = vadd.f32 %v568, %v571
        %v575 = vld [vmem:[#allocation8] sm:$0xff]
        %v576 = vld [vmem:[#allocation8 + $0x8] sm:$0xff]
        %v577 = vld [vmem:[#allocation8 + $0x10] sm:$0xff]
        %v578 = vld [vmem:[#allocation8 + $0x18] sm:$0xff]
        %v579 = vld [vmem:[#allocation8 + $0x20] sm:$0xff]
        %v580 = vld [vmem:[#allocation8 + $0x28] sm:$0xff]
        %v581 = vld [vmem:[#allocation8 + $0x30] sm:$0xff]
        %v582 = vld [vmem:[#allocation8 + $0x38] sm:$0xff]
        %v583 = vld [vmem:[%s5] sm:$0x1]
        %v585 = vperm.slane %v583, 0
        %v588 = vsel %vm466, %v573, 0
        %v591 = vsel %vm466, %v574, 0
        %593 = vmatpush.msra.mxu0 0.0
        %594 = vmatpush.msra.mxu0 0.0
        %595 = vmatpush.msra.mxu0 0.0
        %596 = vmatpush.msra.mxu0 0.0
        %597 = vmatpush.msra.mxu0 0.0
        %598 = vmatpush.msra.mxu0 0.0
        %599 = vmatpush.msra.mxu0 0.0
        %600 = vmatpush.msra.mxu0 0.0
        %601 = vmatpush.msra.mxu0 %v582
        %602 = vmatpush.msra.mxu0 %v581
        %603 = vmatpush.msra.mxu0 %v580
        %604 = vmatpush.msra.mxu0 %v579
        %605 = vmatpush.msra.mxu0 %v578
        %606 = vmatpush.msra.mxu0 %v577
        %607 = vmatpush.msra.mxu0 %v576
        %608 = vmatpush.msra.mxu0 %v575
        %609 = vmatmul.f32.gmra.mxu0 %v588
        %v610 = vpop.f32.mrf.mxu0
        %v611 = vadd.f32 %v585, %v610
        %612 = vmatmul.f32.gmra.mxu0 %v591
        %v613 = vpop.f32.mrf.mxu0
        %v614 = vadd.f32 %v585, %v613
        %615 = vdwg.mxu0
        %vm616 = vcmask 261120
        %v618 = vsel %vm616, %v509, 0
        %v621 = vsel %vm616, %v512, 0
        %v624 = vsel %vm616, %v515, 0
        %v627 = vsel %vm616, %v518, 0
        %v630 = vsel %vm616, %v521, 0
        %v633 = vsel %vm616, %v524, 0
        %v636 = vsel %vm616, %v527, 0
        %v639 = vsel %vm616, %v530, 0
        %v642 = vsel %vm616, %v611, 0
        %v645 = vsel %vm616, %v614, 0
        %647 = vmatpush.xpose.msra.mxu0 0.0
        %648 = vmatpush.xpose.msra.mxu0 0.0
        %649 = vmatpush.xpose.msra.mxu0 0.0
        %650 = vmatpush.xpose.msra.mxu0 0.0
        %651 = vmatpush.xpose.msra.mxu0 0.0
        %652 = vmatpush.xpose.msra.mxu0 0.0
        %653 = vmatpush.xpose.msra.mxu0 0.0
        %654 = vmatpush.xpose.msra.mxu0 0.0
        %655 = vmatpush.xpose.msra.mxu0 0.0
        %656 = vmatpush.xpose.msra.mxu0 0.0
        %657 = vmatpush.xpose.msra.mxu0 0.0
        %658 = vmatpush.xpose.msra.mxu0 0.0
        %659 = vmatpush.xpose.msra.mxu0 0.0
        %660 = vmatpush.xpose.msra.mxu0 0.0
        %661 = vmatpush.xpose.msra.mxu0 %v645
        %662 = vmatpush.xpose.msra.mxu0 %v642
        %663 = vmatmul.f32.gmra.mxu0 %v618
        %v664 = vpop.f32.mrf.mxu0
        %v665 = vadd.f32 0.0, %v664
        %666 = vmatmul.f32.gmra.mxu0 %v621
        %v667 = vpop.f32.mrf.mxu0
        %v668 = vadd.f32 0.0, %v667
        %669 = vmatmul.f32.gmra.mxu0 %v624
        %v670 = vpop.f32.mrf.mxu0
        %v671 = vadd.f32 0.0, %v670
        %672 = vmatmul.f32.gmra.mxu0 %v627
        %v673 = vpop.f32.mrf.mxu0
        %v674 = vadd.f32 0.0, %v673
        %675 = vmatmul.f32.gmra.mxu0 %v630
        %v676 = vpop.f32.mrf.mxu0
        %v677 = vadd.f32 0.0, %v676
        %678 = vmatmul.f32.gmra.mxu0 %v633
        %v679 = vpop.f32.mrf.mxu0
        %v680 = vadd.f32 0.0, %v679
        %681 = vmatmul.f32.gmra.mxu0 %v636
        %v682 = vpop.f32.mrf.mxu0
        %v683 = vadd.f32 0.0, %v682
        %684 = vmatmul.f32.gmra.mxu0 %v639
        %v685 = vpop.f32.mrf.mxu0
        %v686 = vadd.f32 0.0, %v685
        %687 = vdwg.mxu0
        %vm688 = vcmask 130048
        %v689 = vsel %vm688, %v665, -inf
        %690 = vmax.xlane.f32.xlu0 %v689
        %v691 = vpop.xlane.xlu0 %690
        %v692 = vsel %vm688, %v668, -inf
        %693 = vmax.xlane.f32.xlu0 %v692
        %v694 = vpop.xlane.xlu0 %693
        %v695 = vsel %vm688, %v671, -inf
        %696 = vmax.xlane.f32.xlu0 %v695
        %v697 = vpop.xlane.xlu0 %696
        %v698 = vsel %vm688, %v674, -inf
        %699 = vmax.xlane.f32.xlu0 %v698
        %v700 = vpop.xlane.xlu0 %699
        %v701 = vsel %vm688, %v677, -inf
        %702 = vmax.xlane.f32.xlu0 %v701
        %v703 = vpop.xlane.xlu0 %702
        %v704 = vsel %vm688, %v680, -inf
        %705 = vmax.xlane.f32.xlu0 %v704
        %v706 = vpop.xlane.xlu0 %705
        %v707 = vsel %vm688, %v683, -inf
        %708 = vmax.xlane.f32.xlu0 %v707
        %v709 = vpop.xlane.xlu0 %708
        %v710 = vsel %vm688, %v686, -inf
        %711 = vmax.xlane.f32.xlu0 %v710
        %v712 = vpop.xlane.xlu0 %711
        %v713 = vsub.f32 %v665, %v691
        %v714 = vsub.f32 %v668, %v694
        %v715 = vsub.f32 %v671, %v697
        %v716 = vsub.f32 %v674, %v700
        %v717 = vsub.f32 %v677, %v703
        %v718 = vsub.f32 %v680, %v706
        %v719 = vsub.f32 %v683, %v709
        %v720 = vsub.f32 %v686, %v712
        %v721 = vmul.f32 %v713, 1.442695
        %v722 = vpow.pop %v721
        %v723 = vmul.f32 %v714, 1.442695
        %v724 = vpow.pop %v723
        %v725 = vmul.f32 %v715, 1.442695
        %v726 = vpow.pop %v725
        %v727 = vmul.f32 %v716, 1.442695
        %v728 = vpow.pop %v727
        %v729 = vmul.f32 %v717, 1.442695
        %v730 = vpow.pop %v729
        %v731 = vmul.f32 %v718, 1.442695
        %v732 = vpow.pop %v731
        %v733 = vmul.f32 %v719, 1.442695
        %v734 = vpow.pop %v733
        %v735 = vmul.f32 %v720, 1.442695
        %v736 = vpow.pop %v735
        %v737 = vsel %vm688, %v722, 0.0
        %738 = vadd.xlane.f32.xlu0 %v737
        %v739 = vpop.xlane.xlu0 %738
        %v740 = vsel %vm688, %v724, 0.0
        %741 = vadd.xlane.f32.xlu0 %v740
        %v742 = vpop.xlane.xlu0 %741
        %v743 = vsel %vm688, %v726, 0.0
        %744 = vadd.xlane.f32.xlu0 %v743
        %v745 = vpop.xlane.xlu0 %744
        %v746 = vsel %vm688, %v728, 0.0
        %747 = vadd.xlane.f32.xlu0 %v746
        %v748 = vpop.xlane.xlu0 %747
        %v749 = vsel %vm688, %v730, 0.0
        %750 = vadd.xlane.f32.xlu0 %v749
        %v751 = vpop.xlane.xlu0 %750
        %v752 = vsel %vm688, %v732, 0.0
        %753 = vadd.xlane.f32.xlu0 %v752
        %v754 = vpop.xlane.xlu0 %753
        %v755 = vsel %vm688, %v734, 0.0
        %756 = vadd.xlane.f32.xlu0 %v755
        %v757 = vpop.xlane.xlu0 %756
        %v758 = vsel %vm688, %v736, 0.0
        %759 = vadd.xlane.f32.xlu0 %v758
        %v760 = vpop.xlane.xlu0 %759
        %v761 = vrcp.pop %v739
        %v762 = vmul.f32 %v739, %v761
        %v763 = vsub.f32 1.0, %v762
        %v764 = vmul.f32 %v761, %v763
        %v765 = vadd.f32 %v761, %v764
        %vm766 = vweird.f32 %v739
        %vm767 = vweird.f32 %v761
        %vm768 = vmor %vm766, %vm767
        %v769 = vsel %vm768, %v761, %v765
        %v770 = vand.u32 2147483647, %v739
        %vm771 = vcmp.eq.f32.partialorder %v770, 8.507059e+37
        %v772 = vand.u32 %v739, 2147483648
        %v773 = vor.u32 1.1754944e-38, %v772
        %v774 = vsel %vm771, %v773, %v769
        %v775 = vrcp.pop %v742
        %v776 = vmul.f32 %v742, %v775
        %v777 = vsub.f32 1.0, %v776
        %v778 = vmul.f32 %v775, %v777
        %v779 = vadd.f32 %v775, %v778
        %vm780 = vweird.f32 %v742
        %vm781 = vweird.f32 %v775
        %vm782 = vmor %vm780, %vm781
        %v783 = vsel %vm782, %v775, %v779
        %v784 = vand.u32 2147483647, %v742
        %vm785 = vcmp.eq.f32.partialorder %v784, 8.507059e+37
        %v786 = vand.u32 %v742, 2147483648
        %v787 = vor.u32 1.1754944e-38, %v786
        %v788 = vsel %vm785, %v787, %v783
        %v789 = vrcp.pop %v745
        %v790 = vmul.f32 %v745, %v789
        %v791 = vsub.f32 1.0, %v790
        %v792 = vmul.f32 %v789, %v791
        %v793 = vadd.f32 %v789, %v792
        %vm794 = vweird.f32 %v745
        %vm795 = vweird.f32 %v789
        %vm796 = vmor %vm794, %vm795
        %v797 = vsel %vm796, %v789, %v793
        %v798 = vand.u32 2147483647, %v745
        %vm799 = vcmp.eq.f32.partialorder %v798, 8.507059e+37
        %v800 = vand.u32 %v745, 2147483648
        %v801 = vor.u32 1.1754944e-38, %v800
        %v802 = vsel %vm799, %v801, %v797
        %v803 = vrcp.pop %v748
        %v804 = vmul.f32 %v748, %v803
        %v805 = vsub.f32 1.0, %v804
        %v806 = vmul.f32 %v803, %v805
        %v807 = vadd.f32 %v803, %v806
        %vm808 = vweird.f32 %v748
        %vm809 = vweird.f32 %v803
        %vm810 = vmor %vm808, %vm809
        %v811 = vsel %vm810, %v803, %v807
        %v812 = vand.u32 2147483647, %v748
        %vm813 = vcmp.eq.f32.partialorder %v812, 8.507059e+37
        %v814 = vand.u32 %v748, 2147483648
        %v815 = vor.u32 1.1754944e-38, %v814
        %v816 = vsel %vm813, %v815, %v811
        %v817 = vrcp.pop %v751
        %v818 = vmul.f32 %v751, %v817
        %v819 = vsub.f32 1.0, %v818
        %v820 = vmul.f32 %v817, %v819
        %v821 = vadd.f32 %v817, %v820
        %vm822 = vweird.f32 %v751
        %vm823 = vweird.f32 %v817
        %vm824 = vmor %vm822, %vm823
        %v825 = vsel %vm824, %v817, %v821
        %v826 = vand.u32 2147483647, %v751
        %vm827 = vcmp.eq.f32.partialorder %v826, 8.507059e+37
        %v828 = vand.u32 %v751, 2147483648
        %v829 = vor.u32 1.1754944e-38, %v828
        %v830 = vsel %vm827, %v829, %v825
        %v831 = vrcp.pop %v754
        %v832 = vmul.f32 %v754, %v831
        %v833 = vsub.f32 1.0, %v832
        %v834 = vmul.f32 %v831, %v833
        %v835 = vadd.f32 %v831, %v834
        %vm836 = vweird.f32 %v754
        %vm837 = vweird.f32 %v831
        %vm838 = vmor %vm836, %vm837
        %v839 = vsel %vm838, %v831, %v835
        %v840 = vand.u32 2147483647, %v754
        %vm841 = vcmp.eq.f32.partialorder %v840, 8.507059e+37
        %v842 = vand.u32 %v754, 2147483648
        %v843 = vor.u32 1.1754944e-38, %v842
        %v844 = vsel %vm841, %v843, %v839
        %v845 = vrcp.pop %v757
        %v846 = vmul.f32 %v757, %v845
        %v847 = vsub.f32 1.0, %v846
        %v848 = vmul.f32 %v845, %v847
        %v849 = vadd.f32 %v845, %v848
        %vm850 = vweird.f32 %v757
        %vm851 = vweird.f32 %v845
        %vm852 = vmor %vm850, %vm851
        %v853 = vsel %vm852, %v845, %v849
        %v854 = vand.u32 2147483647, %v757
        %vm855 = vcmp.eq.f32.partialorder %v854, 8.507059e+37
        %v856 = vand.u32 %v757, 2147483648
        %v857 = vor.u32 1.1754944e-38, %v856
        %v858 = vsel %vm855, %v857, %v853
        %v859 = vrcp.pop %v760
        %v860 = vmul.f32 %v760, %v859
        %v861 = vsub.f32 1.0, %v860
        %v862 = vmul.f32 %v859, %v861
        %v863 = vadd.f32 %v859, %v862
        %vm864 = vweird.f32 %v760
        %vm865 = vweird.f32 %v859
        %vm866 = vmor %vm864, %vm865
        %v867 = vsel %vm866, %v859, %v863
        %v868 = vand.u32 2147483647, %v760
        %vm869 = vcmp.eq.f32.partialorder %v868, 8.507059e+37
        %v870 = vand.u32 %v760, 2147483648
        %v871 = vor.u32 1.1754944e-38, %v870
        %v872 = vsel %vm869, %v871, %v867
        %v873 = vmul.f32 %v722, %v774
        %v874 = vmul.f32 %v724, %v788
        %v875 = vmul.f32 %v726, %v802
        %v876 = vmul.f32 %v728, %v816
        %v877 = vmul.f32 %v730, %v830
        %v878 = vmul.f32 %v732, %v844
        %v879 = vmul.f32 %v734, %v858
        %v880 = vmul.f32 %v736, %v872
        %881 = vrot.lane.b32.xlu0 %v611, 64
        %v882 = vpop.permute.xlu0 %881
        %883 = vrot.lane.b32.xlu0 %v614, 64
        %v884 = vpop.permute.xlu0 %883
        %v888 = vsel %vm688, %v873, 0
        %v891 = vsel %vm688, %v874, 0
        %v894 = vsel %vm688, %v875, 0
        %v897 = vsel %vm688, %v876, 0
        %v900 = vsel %vm688, %v877, 0
        %v903 = vsel %vm688, %v878, 0
        %v906 = vsel %vm688, %v879, 0
        %v909 = vsel %vm688, %v880, 0
        %911 = vmatpush.msra.mxu0 0.0
        %912 = vmatpush.msra.mxu0 0.0
        %913 = vmatpush.msra.mxu0 0.0
        %914 = vmatpush.msra.mxu0 0.0
        %915 = vmatpush.msra.mxu0 0.0
        %916 = vmatpush.msra.mxu0 0.0
        %917 = vmatpush.msra.mxu0 0.0
        %918 = vmatpush.msra.mxu0 0.0
        %919 = vmatpush.msra.mxu0 0.0
        %920 = vmatpush.msra.mxu0 0.0
        %921 = vmatpush.msra.mxu0 0.0
        %922 = vmatpush.msra.mxu0 0.0
        %923 = vmatpush.msra.mxu0 0.0
        %924 = vmatpush.msra.mxu0 0.0
        %925 = vmatpush.msra.mxu0 %v884
        %926 = vmatpush.msra.mxu0 %v882
        %927 = vmatmul.f32.gmra.mxu0 %v888
        %v928 = vpop.f32.mrf.mxu0
        %v929 = vadd.f32 0.0, %v928
        %930 = vmatmul.f32.gmra.mxu0 %v891
        %v931 = vpop.f32.mrf.mxu0
        %v932 = vadd.f32 0.0, %v931
        %933 = vmatmul.f32.gmra.mxu0 %v894
        %v934 = vpop.f32.mrf.mxu0
        %v935 = vadd.f32 0.0, %v934
        %936 = vmatmul.f32.gmra.mxu0 %v897
        %v937 = vpop.f32.mrf.mxu0
        %v938 = vadd.f32 0.0, %v937
        %939 = vmatmul.f32.gmra.mxu0 %v900
        %v940 = vpop.f32.mrf.mxu0
        %v941 = vadd.f32 0.0, %v940
        %942 = vmatmul.f32.gmra.mxu0 %v903
        %v943 = vpop.f32.mrf.mxu0
        %v944 = vadd.f32 0.0, %v943
        %945 = vmatmul.f32.gmra.mxu0 %v906
        %v946 = vpop.f32.mrf.mxu0
        %v947 = vadd.f32 0.0, %v946
        %948 = vmatmul.f32.gmra.mxu0 %v909
        %v949 = vpop.f32.mrf.mxu0
        %v950 = vadd.f32 0.0, %v949
        %951 = vdwg.mxu0
        %v952 = vld [vmem:[#allocation10] sm:$0xff]
        %v953 = vld [vmem:[#allocation10 + $0x8] sm:$0xff]
        %v954 = vld [vmem:[#allocation10 + $0x10] sm:$0xff]
        %v955 = vld [vmem:[#allocation10 + $0x18] sm:$0xff]
        %956 = vrot.lane.b32.xlu0 %v509, 96
        %v957 = vpop.permute.xlu0 %956
        %958 = vrot.lane.b32.xlu0 %v512, 96
        %v959 = vpop.permute.xlu0 %958
        %960 = vrot.lane.b32.xlu0 %v515, 96
        %v961 = vpop.permute.xlu0 %960
        %962 = vrot.lane.b32.xlu0 %v518, 96
        %v963 = vpop.permute.xlu0 %962
        %964 = vrot.lane.b32.xlu0 %v521, 96
        %v965 = vpop.permute.xlu0 %964
        %966 = vrot.lane.b32.xlu0 %v524, 96
        %v967 = vpop.permute.xlu0 %966
        %968 = vrot.lane.b32.xlu0 %v527, 96
        %v969 = vpop.permute.xlu0 %968
        %970 = vrot.lane.b32.xlu0 %v530, 96
        %v971 = vpop.permute.xlu0 %970
        %972 = vrot.lane.b32.xlu0 %v611, 96
        %v973 = vpop.permute.xlu0 %972
        %974 = vrot.lane.b32.xlu0 %v614, 96
        %v975 = vpop.permute.xlu0 %974
        %v976 = vsel %vm616, %v957, 0
        %v978 = vsel %vm616, %v959, 0
        %v980 = vsel %vm616, %v961, 0
        %v982 = vsel %vm616, %v963, 0
        %v984 = vsel %vm616, %v965, 0
        %v986 = vsel %vm616, %v967, 0
        %v988 = vsel %vm616, %v969, 0
        %v990 = vsel %vm616, %v971, 0
        %v992 = vsel %vm616, %v973, 0
        %v994 = vsel %vm616, %v975, 0
        %996 = vmatpush.xpose.msra.mxu0 0.0
        %997 = vmatpush.xpose.msra.mxu0 0.0
        %998 = vmatpush.xpose.msra.mxu0 0.0
        %999 = vmatpush.xpose.msra.mxu0 0.0
        %1000 = vmatpush.xpose.msra.mxu0 0.0
        %1001 = vmatpush.xpose.msra.mxu0 0.0
        %1002 = vmatpush.xpose.msra.mxu0 0.0
        %1003 = vmatpush.xpose.msra.mxu0 0.0
        %1004 = vmatpush.xpose.msra.mxu0 0.0
        %1005 = vmatpush.xpose.msra.mxu0 0.0
        %1006 = vmatpush.xpose.msra.mxu0 0.0
        %1007 = vmatpush.xpose.msra.mxu0 0.0
        %1008 = vmatpush.xpose.msra.mxu0 0.0
        %1009 = vmatpush.xpose.msra.mxu0 0.0
        %1010 = vmatpush.xpose.msra.mxu0 %v994
        %1011 = vmatpush.xpose.msra.mxu0 %v992
        %1012 = vmatmul.f32.gmra.mxu0 %v976
        %v1013 = vpop.f32.mrf.mxu0
        %v1014 = vadd.f32 0.0, %v1013
        %1015 = vmatmul.f32.gmra.mxu0 %v978
        %v1016 = vpop.f32.mrf.mxu0
        %v1017 = vadd.f32 0.0, %v1016
        %1018 = vmatmul.f32.gmra.mxu0 %v980
        %v1019 = vpop.f32.mrf.mxu0
        %v1020 = vadd.f32 0.0, %v1019
        %1021 = vmatmul.f32.gmra.mxu0 %v982
        %v1022 = vpop.f32.mrf.mxu0
        %v1023 = vadd.f32 0.0, %v1022
        %1024 = vmatmul.f32.gmra.mxu0 %v984
        %v1025 = vpop.f32.mrf.mxu0
        %v1026 = vadd.f32 0.0, %v1025
        %1027 = vmatmul.f32.gmra.mxu0 %v986
        %v1028 = vpop.f32.mrf.mxu0
        %v1029 = vadd.f32 0.0, %v1028
        %1030 = vmatmul.f32.gmra.mxu0 %v988
        %v1031 = vpop.f32.mrf.mxu0
        %v1032 = vadd.f32 0.0, %v1031
        %1033 = vmatmul.f32.gmra.mxu0 %v990
        %v1034 = vpop.f32.mrf.mxu0
        %v1035 = vadd.f32 0.0, %v1034
        %1036 = vdwg.mxu0
        %v1037 = vsel %vm688, %v1014, -inf
        %1038 = vmax.xlane.f32.xlu0 %v1037
        %v1039 = vpop.xlane.xlu0 %1038
        %v1040 = vsel %vm688, %v1017, -inf
        %1041 = vmax.xlane.f32.xlu0 %v1040
        %v1042 = vpop.xlane.xlu0 %1041
        %v1043 = vsel %vm688, %v1020, -inf
        %1044 = vmax.xlane.f32.xlu0 %v1043
        %v1045 = vpop.xlane.xlu0 %1044
        %v1046 = vsel %vm688, %v1023, -inf
        %1047 = vmax.xlane.f32.xlu0 %v1046
        %v1048 = vpop.xlane.xlu0 %1047
        %v1049 = vsel %vm688, %v1026, -inf
        %1050 = vmax.xlane.f32.xlu0 %v1049
        %v1051 = vpop.xlane.xlu0 %1050
        %v1052 = vsel %vm688, %v1029, -inf
        %1053 = vmax.xlane.f32.xlu0 %v1052
        %v1054 = vpop.xlane.xlu0 %1053
        %v1055 = vsel %vm688, %v1032, -inf
        %1056 = vmax.xlane.f32.xlu0 %v1055
        %v1057 = vpop.xlane.xlu0 %1056
        %v1058 = vsel %vm688, %v1035, -inf
        %1059 = vmax.xlane.f32.xlu0 %v1058
        %v1060 = vpop.xlane.xlu0 %1059
        %v1061 = vsub.f32 %v1014, %v1039
        %v1062 = vsub.f32 %v1017, %v1042
        %v1063 = vsub.f32 %v1020, %v1045
        %v1064 = vsub.f32 %v1023, %v1048
        %v1065 = vsub.f32 %v1026, %v1051
        %v1066 = vsub.f32 %v1029, %v1054
        %v1067 = vsub.f32 %v1032, %v1057
        %v1068 = vsub.f32 %v1035, %v1060
        %v1069 = vmul.f32 %v1061, 1.442695
        %v1070 = vpow.pop %v1069
        %v1071 = vmul.f32 %v1062, 1.442695
        %v1072 = vpow.pop %v1071
        %v1073 = vmul.f32 %v1063, 1.442695
        %v1074 = vpow.pop %v1073
        %v1075 = vmul.f32 %v1064, 1.442695
        %v1076 = vpow.pop %v1075
        %v1077 = vmul.f32 %v1065, 1.442695
        %v1078 = vpow.pop %v1077
        %v1079 = vmul.f32 %v1066, 1.442695
        %v1080 = vpow.pop %v1079
        %v1081 = vmul.f32 %v1067, 1.442695
        %v1082 = vpow.pop %v1081
        %v1083 = vmul.f32 %v1068, 1.442695
        %v1084 = vpow.pop %v1083
        %v1085 = vsel %vm688, %v1070, 0.0
        %1086 = vadd.xlane.f32.xlu0 %v1085
        %v1087 = vpop.xlane.xlu0 %1086
        %v1088 = vsel %vm688, %v1072, 0.0
        %1089 = vadd.xlane.f32.xlu0 %v1088
        %v1090 = vpop.xlane.xlu0 %1089
        %v1091 = vsel %vm688, %v1074, 0.0
        %1092 = vadd.xlane.f32.xlu0 %v1091
        %v1093 = vpop.xlane.xlu0 %1092
        %v1094 = vsel %vm688, %v1076, 0.0
        %1095 = vadd.xlane.f32.xlu0 %v1094
        %v1096 = vpop.xlane.xlu0 %1095
        %v1097 = vsel %vm688, %v1078, 0.0
        %1098 = vadd.xlane.f32.xlu0 %v1097
        %v1099 = vpop.xlane.xlu0 %1098
        %v1100 = vsel %vm688, %v1080, 0.0
        %1101 = vadd.xlane.f32.xlu0 %v1100
        %v1102 = vpop.xlane.xlu0 %1101
        %v1103 = vsel %vm688, %v1082, 0.0
        %1104 = vadd.xlane.f32.xlu0 %v1103
        %v1105 = vpop.xlane.xlu0 %1104
        %v1106 = vsel %vm688, %v1084, 0.0
        %1107 = vadd.xlane.f32.xlu0 %v1106
        %v1108 = vpop.xlane.xlu0 %1107
        %v1109 = vrcp.pop %v1087
        %v1110 = vmul.f32 %v1087, %v1109
        %v1111 = vsub.f32 1.0, %v1110
        %v1112 = vmul.f32 %v1109, %v1111
        %v1113 = vadd.f32 %v1109, %v1112
        %vm1114 = vweird.f32 %v1087
        %vm1115 = vweird.f32 %v1109
        %vm1116 = vmor %vm1114, %vm1115
        %v1117 = vsel %vm1116, %v1109, %v1113
        %v1118 = vand.u32 2147483647, %v1087
        %vm1119 = vcmp.eq.f32.partialorder %v1118, 8.507059e+37
        %v1120 = vand.u32 %v1087, 2147483648
        %v1121 = vor.u32 1.1754944e-38, %v1120
        %v1122 = vsel %vm1119, %v1121, %v1117
        %v1123 = vrcp.pop %v1090
        %v1124 = vmul.f32 %v1090, %v1123
        %v1125 = vsub.f32 1.0, %v1124
        %v1126 = vmul.f32 %v1123, %v1125
        %v1127 = vadd.f32 %v1123, %v1126
        %vm1128 = vweird.f32 %v1090
        %vm1129 = vweird.f32 %v1123
        %vm1130 = vmor %vm1128, %vm1129
        %v1131 = vsel %vm1130, %v1123, %v1127
        %v1132 = vand.u32 2147483647, %v1090
        %vm1133 = vcmp.eq.f32.partialorder %v1132, 8.507059e+37
        %v1134 = vand.u32 %v1090, 2147483648
        %v1135 = vor.u32 1.1754944e-38, %v1134
        %v1136 = vsel %vm1133, %v1135, %v1131
        %v1137 = vrcp.pop %v1093
        %v1138 = vmul.f32 %v1093, %v1137
        %v1139 = vsub.f32 1.0, %v1138
        %v1140 = vmul.f32 %v1137, %v1139
        %v1141 = vadd.f32 %v1137, %v1140
        %vm1142 = vweird.f32 %v1093
        %vm1143 = vweird.f32 %v1137
        %vm1144 = vmor %vm1142, %vm1143
        %v1145 = vsel %vm1144, %v1137, %v1141
        %v1146 = vand.u32 2147483647, %v1093
        %vm1147 = vcmp.eq.f32.partialorder %v1146, 8.507059e+37
        %v1148 = vand.u32 %v1093, 2147483648
        %v1149 = vor.u32 1.1754944e-38, %v1148
        %v1150 = vsel %vm1147, %v1149, %v1145
        %v1151 = vrcp.pop %v1096
        %v1152 = vmul.f32 %v1096, %v1151
        %v1153 = vsub.f32 1.0, %v1152
        %v1154 = vmul.f32 %v1151, %v1153
        %v1155 = vadd.f32 %v1151, %v1154
        %vm1156 = vweird.f32 %v1096
        %vm1157 = vweird.f32 %v1151
        %vm1158 = vmor %vm1156, %vm1157
        %v1159 = vsel %vm1158, %v1151, %v1155
        %v1160 = vand.u32 2147483647, %v1096
        %vm1161 = vcmp.eq.f32.partialorder %v1160, 8.507059e+37
        %v1162 = vand.u32 %v1096, 2147483648
        %v1163 = vor.u32 1.1754944e-38, %v1162
        %v1164 = vsel %vm1161, %v1163, %v1159
        %v1165 = vrcp.pop %v1099
        %v1166 = vmul.f32 %v1099, %v1165
        %v1167 = vsub.f32 1.0, %v1166
        %v1168 = vmul.f32 %v1165, %v1167
        %v1169 = vadd.f32 %v1165, %v1168
        %vm1170 = vweird.f32 %v1099
        %vm1171 = vweird.f32 %v1165
        %vm1172 = vmor %vm1170, %vm1171
        %v1173 = vsel %vm1172, %v1165, %v1169
        %v1174 = vand.u32 2147483647, %v1099
        %vm1175 = vcmp.eq.f32.partialorder %v1174, 8.507059e+37
        %v1176 = vand.u32 %v1099, 2147483648
        %v1177 = vor.u32 1.1754944e-38, %v1176
        %v1178 = vsel %vm1175, %v1177, %v1173
        %v1179 = vrcp.pop %v1102
        %v1180 = vmul.f32 %v1102, %v1179
        %v1181 = vsub.f32 1.0, %v1180
        %v1182 = vmul.f32 %v1179, %v1181
        %v1183 = vadd.f32 %v1179, %v1182
        %vm1184 = vweird.f32 %v1102
        %vm1185 = vweird.f32 %v1179
        %vm1186 = vmor %vm1184, %vm1185
        %v1187 = vsel %vm1186, %v1179, %v1183
        %v1188 = vand.u32 2147483647, %v1102
        %vm1189 = vcmp.eq.f32.partialorder %v1188, 8.507059e+37
        %v1190 = vand.u32 %v1102, 2147483648
        %v1191 = vor.u32 1.1754944e-38, %v1190
        %v1192 = vsel %vm1189, %v1191, %v1187
        %v1193 = vrcp.pop %v1105
        %v1194 = vmul.f32 %v1105, %v1193
        %v1195 = vsub.f32 1.0, %v1194
        %v1196 = vmul.f32 %v1193, %v1195
        %v1197 = vadd.f32 %v1193, %v1196
        %vm1198 = vweird.f32 %v1105
        %vm1199 = vweird.f32 %v1193
        %vm1200 = vmor %vm1198, %vm1199
        %v1201 = vsel %vm1200, %v1193, %v1197
        %v1202 = vand.u32 2147483647, %v1105
        %vm1203 = vcmp.eq.f32.partialorder %v1202, 8.507059e+37
        %v1204 = vand.u32 %v1105, 2147483648
        %v1205 = vor.u32 1.1754944e-38, %v1204
        %v1206 = vsel %vm1203, %v1205, %v1201
        %v1207 = vrcp.pop %v1108
        %v1208 = vmul.f32 %v1108, %v1207
        %v1209 = vsub.f32 1.0, %v1208
        %v1210 = vmul.f32 %v1207, %v1209
        %v1211 = vadd.f32 %v1207, %v1210
        %vm1212 = vweird.f32 %v1108
        %vm1213 = vweird.f32 %v1207
        %vm1214 = vmor %vm1212, %vm1213
        %v1215 = vsel %vm1214, %v1207, %v1211
        %v1216 = vand.u32 2147483647, %v1108
        %vm1217 = vcmp.eq.f32.partialorder %v1216, 8.507059e+37
        %v1218 = vand.u32 %v1108, 2147483648
        %v1219 = vor.u32 1.1754944e-38, %v1218
        %v1220 = vsel %vm1217, %v1219, %v1215
        %v1221 = vmul.f32 %v1070, %v1122
        %v1222 = vmul.f32 %v1072, %v1136
        %v1223 = vmul.f32 %v1074, %v1150
        %v1224 = vmul.f32 %v1076, %v1164
        %v1225 = vmul.f32 %v1078, %v1178
        %v1226 = vmul.f32 %v1080, %v1192
        %v1227 = vmul.f32 %v1082, %v1206
        %v1228 = vmul.f32 %v1084, %v1220
        %1229 = vrot.lane.b32.xlu0 %v611, 32
        %v1230 = vpop.permute.xlu0 %1229
        %1231 = vrot.lane.b32.xlu0 %v614, 32
        %v1232 = vpop.permute.xlu0 %1231
        %v1236 = vsel %vm688, %v1221, 0
        %v1239 = vsel %vm688, %v1222, 0
        %v1242 = vsel %vm688, %v1223, 0
        %v1245 = vsel %vm688, %v1224, 0
        %v1248 = vsel %vm688, %v1225, 0
        %v1251 = vsel %vm688, %v1226, 0
        %v1254 = vsel %vm688, %v1227, 0
        %v1257 = vsel %vm688, %v1228, 0
        %1259 = vmatpush.msra.mxu0 0.0
        %1260 = vmatpush.msra.mxu0 0.0
        %1261 = vmatpush.msra.mxu0 0.0
        %1262 = vmatpush.msra.mxu0 0.0
        %1263 = vmatpush.msra.mxu0 0.0
        %1264 = vmatpush.msra.mxu0 0.0
        %1265 = vmatpush.msra.mxu0 0.0
        %1266 = vmatpush.msra.mxu0 0.0
        %1267 = vmatpush.msra.mxu0 0.0
        %1268 = vmatpush.msra.mxu0 0.0
        %1269 = vmatpush.msra.mxu0 0.0
        %1270 = vmatpush.msra.mxu0 0.0
        %1271 = vmatpush.msra.mxu0 0.0
        %1272 = vmatpush.msra.mxu0 0.0
        %1273 = vmatpush.msra.mxu0 %v1232
        %1274 = vmatpush.msra.mxu0 %v1230
        %1275 = vmatmul.f32.gmra.mxu0 %v1236
        %v1276 = vpop.f32.mrf.mxu0
        %v1277 = vadd.f32 0.0, %v1276
        %1278 = vmatmul.f32.gmra.mxu0 %v1239
        %v1279 = vpop.f32.mrf.mxu0
        %v1280 = vadd.f32 0.0, %v1279
        %1281 = vmatmul.f32.gmra.mxu0 %v1242
        %v1282 = vpop.f32.mrf.mxu0
        %v1283 = vadd.f32 0.0, %v1282
        %1284 = vmatmul.f32.gmra.mxu0 %v1245
        %v1285 = vpop.f32.mrf.mxu0
        %v1286 = vadd.f32 0.0, %v1285
        %1287 = vmatmul.f32.gmra.mxu0 %v1248
        %v1288 = vpop.f32.mrf.mxu0
        %v1289 = vadd.f32 0.0, %v1288
        %1290 = vmatmul.f32.gmra.mxu0 %v1251
        %v1291 = vpop.f32.mrf.mxu0
        %v1292 = vadd.f32 0.0, %v1291
        %1293 = vmatmul.f32.gmra.mxu0 %v1254
        %v1294 = vpop.f32.mrf.mxu0
        %v1295 = vadd.f32 0.0, %v1294
        %1296 = vmatmul.f32.gmra.mxu0 %v1257
        %v1297 = vpop.f32.mrf.mxu0
        %v1298 = vadd.f32 0.0, %v1297
        %1299 = vdwg.mxu0
        %v1300 = vld [vmem:[#allocation10 + $0x20] sm:$0xff]
        %v1301 = vld [vmem:[#allocation10 + $0x28] sm:$0xff]
        %v1302 = vld [vmem:[#allocation10 + $0x30] sm:$0xff]
        %v1303 = vld [vmem:[#allocation10 + $0x38] sm:$0xff]
        %v1305 = vsel %vm616, %v1277, 0
        %v1308 = vsel %vm616, %v1280, 0
        %v1311 = vsel %vm616, %v1283, 0
        %v1314 = vsel %vm616, %v1286, 0
        %v1317 = vsel %vm616, %v1289, 0
        %v1320 = vsel %vm616, %v1292, 0
        %v1323 = vsel %vm616, %v1295, 0
        %v1326 = vsel %vm616, %v1298, 0
        %1328 = vmatpush.msra.mxu0 0.0
        %1329 = vmatpush.msra.mxu0 0.0
        %1330 = vmatpush.msra.mxu0 0.0
        %1331 = vmatpush.msra.mxu0 0.0
        %1332 = vmatpush.msra.mxu0 0.0
        %1333 = vmatpush.msra.mxu0 0.0
        %1334 = vmatpush.msra.mxu0 0.0
        %1335 = vmatpush.msra.mxu0 0.0
        %1336 = vmatpush.msra.mxu0 0.0
        %1337 = vmatpush.msra.mxu0 0.0
        %1338 = vmatpush.msra.mxu0 0.0
        %1339 = vmatpush.msra.mxu0 0.0
        %1340 = vmatpush.msra.mxu0 %v1303
        %1341 = vmatpush.msra.mxu0 %v1302
        %1342 = vmatpush.msra.mxu0 %v1301
        %1343 = vmatpush.msra.mxu0 %v1300
        %1344 = vmatmul.f32.gmra.mxu0 %v1305
        %v1345 = vpop.f32.mrf.mxu0
        %v1346 = vadd.f32 0.0, %v1345
        %1347 = vmatmul.f32.gmra.mxu0 %v1308
        %v1348 = vpop.f32.mrf.mxu0
        %v1349 = vadd.f32 0.0, %v1348
        %1350 = vmatmul.f32.gmra.mxu0 %v1311
        %v1351 = vpop.f32.mrf.mxu0
        %v1352 = vadd.f32 0.0, %v1351
        %1353 = vmatmul.f32.gmra.mxu0 %v1314
        %v1354 = vpop.f32.mrf.mxu0
        %v1355 = vadd.f32 0.0, %v1354
        %1356 = vmatmul.f32.gmra.mxu0 %v1317
        %v1357 = vpop.f32.mrf.mxu0
        %v1358 = vadd.f32 0.0, %v1357
        %1359 = vmatmul.f32.gmra.mxu0 %v1320
        %v1360 = vpop.f32.mrf.mxu0
        %v1361 = vadd.f32 0.0, %v1360
        %1362 = vmatmul.f32.gmra.mxu0 %v1323
        %v1363 = vpop.f32.mrf.mxu0
        %v1364 = vadd.f32 0.0, %v1363
        %1365 = vmatmul.f32.gmra.mxu0 %v1326
        %v1366 = vpop.f32.mrf.mxu0
        %v1367 = vadd.f32 0.0, %v1366
        %1368 = vdwg.mxu0
        %v1370 = vsel %vm616, %v929, 0
        %v1373 = vsel %vm616, %v932, 0
        %v1376 = vsel %vm616, %v935, 0
        %v1379 = vsel %vm616, %v938, 0
        %v1382 = vsel %vm616, %v941, 0
        %v1385 = vsel %vm616, %v944, 0
        %v1388 = vsel %vm616, %v947, 0
        %v1391 = vsel %vm616, %v950, 0
        %1393 = vmatpush.msra.mxu0 0.0
        %1394 = vmatpush.msra.mxu0 0.0
        %1395 = vmatpush.msra.mxu0 0.0
        %1396 = vmatpush.msra.mxu0 0.0
        %1397 = vmatpush.msra.mxu0 0.0
        %1398 = vmatpush.msra.mxu0 0.0
        %1399 = vmatpush.msra.mxu0 0.0
        %1400 = vmatpush.msra.mxu0 0.0
        %1401 = vmatpush.msra.mxu0 0.0
        %1402 = vmatpush.msra.mxu0 0.0
        %1403 = vmatpush.msra.mxu0 0.0
        %1404 = vmatpush.msra.mxu0 0.0
        %1405 = vmatpush.msra.mxu0 %v955
        %1406 = vmatpush.msra.mxu0 %v954
        %1407 = vmatpush.msra.mxu0 %v953
        %1408 = vmatpush.msra.mxu0 %v952
        %1409 = vmatmul.f32.gmra.mxu0 %v1370
        %v1410 = vpop.f32.mrf.mxu0
        %v1411 = vadd.f32 %v1346, %v1410
        %1412 = vmatmul.f32.gmra.mxu0 %v1373
        %v1413 = vpop.f32.mrf.mxu0
        %v1414 = vadd.f32 %v1349, %v1413
        %1415 = vmatmul.f32.gmra.mxu0 %v1376
        %v1416 = vpop.f32.mrf.mxu0
        %v1417 = vadd.f32 %v1352, %v1416
        %1418 = vmatmul.f32.gmra.mxu0 %v1379
        %v1419 = vpop.f32.mrf.mxu0
        %v1420 = vadd.f32 %v1355, %v1419
        %1421 = vmatmul.f32.gmra.mxu0 %v1382
        %v1422 = vpop.f32.mrf.mxu0
        %v1423 = vadd.f32 %v1358, %v1422
        %1424 = vmatmul.f32.gmra.mxu0 %v1385
        %v1425 = vpop.f32.mrf.mxu0
        %v1426 = vadd.f32 %v1361, %v1425
        %1427 = vmatmul.f32.gmra.mxu0 %v1388
        %v1428 = vpop.f32.mrf.mxu0
        %v1429 = vadd.f32 %v1364, %v1428
        %1430 = vmatmul.f32.gmra.mxu0 %v1391
        %v1431 = vpop.f32.mrf.mxu0
        %v1432 = vadd.f32 %v1367, %v1431
        %1433 = vdwg.mxu0
        %v1434 = vld [vmem:[%s7] sm:$0x1]
        %v1436 = vperm.slane %v1434, 0
        %v1438 = vadd.f32 %v1411, %v1436
        %v1439 = vadd.f32 %v1414, %v1436
        %v1440 = vadd.f32 %v1417, %v1436
        %v1441 = vadd.f32 %v1420, %v1436
        %v1442 = vadd.f32 %v1423, %v1436
        %v1443 = vadd.f32 %v1426, %v1436
        %v1444 = vadd.f32 %v1429, %v1436
        %v1445 = vadd.f32 %v1432, %v1436
        %1446 = vst.msk [vmem:[%s445] sm:$0xff] %vm466, %v1438
        %1447 = vst.msk [vmem:[%s445 + $0x8] sm:$0xff] %vm466, %v1439
        %1448 = vst.msk [vmem:[%s445 + $0x10] sm:$0xff] %vm466, %v1440
        %1449 = vst.msk [vmem:[%s445 + $0x18] sm:$0xff] %vm466, %v1441
        %1450 = vst.msk [vmem:[%s445 + $0x20] sm:$0xff] %vm466, %v1442
        %1451 = vst.msk [vmem:[%s445 + $0x28] sm:$0xff] %vm466, %v1443
        %1452 = vst.msk [vmem:[%s445 + $0x30] sm:$0xff] %vm466, %v1444
        %1453 = vst.msk [vmem:[%s445 + $0x38] sm:$0xff] %vm466, %v1445
        %s1454 = sand.u32 %s252, 1
        %s1455 = scalar_lea.sflag [#allocation4], %s1454
        %s1456 = sand.u32 %s252, 1
        %s1457 = smul.addr %s1456, 64
        %s1458 = scalar_lea.vmem [#allocation11], %s1457
        // Predicated region
        $region81: #{tpu_custom_call.1} parent=59 // pred_check
          %p1459 = pneg %p262
        $region82: #{tpu_custom_call.1} parent=59 // pred_check_branch
          %1461 = sbr.rel (%p1459) target = $region84
        $region83: #{tpu_custom_call.1} parent=59 // pred_region
          %1463 = vsyncadd %s1455, 0
          %s1464 = smul.addr %s29, 8
          %s1465 = smul.addr %s1464, 8
          %s1466 = scalar_lea.hbm %s10, %s1465
          %s1467 = sshll.u32 %s1458, 4
          %s1468 = int_to_ptr.vmem [resolvable:$true] %s1467
          %s1469 = sshll.u32 %s1466, 4
          %s1470 = int_to_ptr.hbm [resolvable:$true] %s1469
          %1475 = dma.vmem_to_hbm [thread:$0]  %s1468, 1024, %s1470, %s1455, 128, 128, 8
        $region84: #{tpu_custom_call.1} parent=59 // pred_fallthru
          _
      $region60: #{tpu_custom_call.1} parent=5 // pred_fallthru
        _
      %p1476 = scmp.le.s32.totalorder 2, %s24
      // Predicated region
      $region85: #{tpu_custom_call.1} parent=5 // pred_check
        %p1477 = pneg %p1476
      $region86: #{tpu_custom_call.1} parent=5 // pred_check_branch
        %1479 = sbr.rel (%p1477) target = $region88
      $region87: #{tpu_custom_call.1} parent=5 // pred_region
        %s1480 = ssub.s32 %s24, 2
        // Predicated region
        $region89: #{tpu_custom_call.1} parent=87 // pred_check
          %p1481 = pneg %p268
        $region90: #{tpu_custom_call.1} parent=87 // pred_check_branch
          %1483 = sbr.rel (%p1481) target = $region92
        $region91: #{tpu_custom_call.1} parent=87 // pred_region
          %s1484 = sand.u32 %s253, 1
          %s1485 = scalar_lea.sflag [#allocation4], %s1484
          %s1486 = sand.u32 %s253, 1
          %s1487 = smul.addr %s1486, 64
          %s1488 = scalar_lea.vmem [#allocation11], %s1487
          %1490 = dma.done %s1485, 1024
        $region92: #{tpu_custom_call.1} parent=87 // pred_fallthru
          _
      $region88: #{tpu_custom_call.1} parent=5 // pred_fallthru
        _
    $region6: #{tpu_custom_call.1} parent=1 // loop_footer
      %s28 = sadd.s32 1, %s24
    $region7: #{tpu_custom_call.1} parent=1 // loop_footer_branch
      %23 = sbr.rel target = $region3
    $region8: #{tpu_custom_call.1} parent=1 // loop_exit
      _
    %1491 = vsyncpa [#allocation3], 1
    %s1492 = scalar_lea.sflag [#allocation3], 1
    %1493 = vsyncpa %s1492, 1
    %1494 = vsyncpa [#allocation6], 1
    %1495 = vsyncpa [#allocation9], 1
    %1496 = vsyncpa [#allocation4], 1
    %s1497 = scalar_lea.sflag [#allocation4], 1
    %1498 = vsyncpa %s1497, 1

</llo_original>
